<compile_context>
chip_gen: v5e
topology: v5e:2x2
jax: 0.10.0
libtpu: 0.0.40
codegen_flags: <defaults>
</compile_context>

<pallas_src>
import functools
import numpy as np
import jax
import jax.numpy as jnp
from jax.experimental import pallas as pl
from jax.experimental.pallas import tpu as pltpu


# ----------------------------- Pallas kernel -------------------------------

def _decoder_kernel(x_ref, rt_ref,
                    rrb_ref, rsb_ref, rrt_ref,
                    w1r_ref, w1s_ref, b1_ref, w2_ref, b2_ref,
                    wo1x_ref, wo1a_ref, bo1_ref,
                    wo2_ref, bo2_ref, wo3_ref, bo3_ref,
                    o_ref, *, compute_dtype, pred_steps):
    f32 = jnp.float32
    cd = compute_dtype

    rt = rt_ref[0]                 # [Tpb*E, Ka*msg_out] f32 (host pre-expanded)
    rrb = rrb_ref[...]             # [Tpb*E, Tpb*N]  (0/1 block-diag gather)
    rsb = rsb_ref[...]
    rrt = rrt_ref[...]             # [Tpb*N, Tpb*E]  (0/1 block-diag scatter-add)
    w1r = w1r_ref[...]
    w1s = w1s_ref[...]
    b1 = b1_ref[...]
    w2 = w2_ref[...]
    b2 = b2_ref[...]
    wo1x = wo1x_ref[...]
    wo1a = wo1a_ref[...]
    bo1 = bo1_ref[...]
    wo2 = wo2_ref[...]
    bo2 = bo2_ref[...]
    wo3 = wo3_ref[...]
    bo3 = bo3_ref[...]

    cur = x_ref[0]                 # [Tpb*N, D] f32 (state carried across pred steps)

    # pred_steps is small & static -> unrolled recurrence, state stays on-chip.
    for s in range(pred_steps):
        xc = cur.astype(cd)

        # --- msg fc1 reassociated with the edge gather: project node features
        #     first (lane-dense [Tpb*N, Ka*msg_hid]), then gather edge rows
        #     with the tiny block-diagonal 0/1 matrices.
        xr = jnp.dot(xc, w1r, preferred_element_type=f32)
        xs = jnp.dot(xc, w1s, preferred_element_type=f32)
        h = (jnp.dot(rrb, xr.astype(cd), preferred_element_type=f32)
             + jnp.dot(rsb, xs.astype(cd), preferred_element_type=f32)
             + b1)
        h = jnp.maximum(h, 0.0)                       # [Tpb*E, Ka*msg_hid]
        # TODO(synk): dropout omitted (do_prob=0.0 -> identity).

        # --- msg fc2, all edge types fused (block-diag weight keeps them
        #     independent).
        m = jnp.maximum(
            jnp.dot(h.astype(cd), w2, preferred_element_type=f32) + b2, 0.0)

        # --- per-edge-type weighting: pure VPU elementwise multiply (the
        #     K-contraction matmuls are gone).
        weighted = m * rt                              # [Tpb*E, Ka*msg_out]

        # --- aggregate per receiving node; the sum over edge types is folded
        #     into wo1a (out_fc1 agg-half tiled over the Ka blocks).
        agg = jnp.dot(rrt, weighted.astype(cd), preferred_element_type=f32)

        # --- output MLP on cat([x, agg]); first matmul split on the host.
        h1 = jnp.maximum(
            jnp.dot(xc, wo1x, preferred_element_type=f32)
            + jnp.dot(agg.astype(cd), wo1a, preferred_element_type=f32)
            + bo1, 0.0)
        h2 = jnp.maximum(
            jnp.dot(h1.astype(cd), wo2, preferred_element_type=f32) + bo2, 0.0)
        pred = jnp.dot(h2.astype(cd), wo3, preferred_element_type=f32) + bo3

        cur = cur + pred                               # residual, f32
        o_ref[0, s] = cur


# --------------------- host-side constant / weight prep ---------------------

def _prepare_constants(rel_rec, rel_send, params, *, tp_blk, skip_first,
                       compute_dtype):
    f32 = jnp.float32
    cd = compute_dtype
    E, N = rel_rec.shape
    K, two_d, msg_hid = params["w1"].shape
    D = two_d // 2
    msg_out = params["w2"].shape[-1]
    n_hid = params["wo1"].shape[-1]
    start_idx = 1 if skip_first else 0
    Ka = K - start_idx
    assert Ka >= 1, "skip_first with a single edge type leaves no messages"

    eye = jnp.eye(tp_blk, dtype=f32)
    rr = rel_rec.astype(f32)
    rs = rel_send.astype(f32)
    rrb = jnp.kron(eye, rr).astype(cd)              # [Tpb*E, Tpb*N]
    rsb = jnp.kron(eye, rs).astype(cd)              # [Tpb*E, Tpb*N]
    rrt = jnp.kron(eye, rr.T).astype(cd)            # [Tpb*N, Tpb*E]

    w1 = params["w1"][start_idx:]                   # [Ka, 2D, msg_hid]
    w1r = jnp.transpose(w1[:, :D, :], (1, 0, 2)).reshape(D, Ka * msg_hid).astype(cd)
    w1s = jnp.transpose(w1[:, D:, :], (1, 0, 2)).reshape(D, Ka * msg_hid).astype(cd)
    b1 = params["b1"][start_idx:].reshape(1, Ka * msg_hid).astype(f32)

    w2 = params["w2"][start_idx:]                   # [Ka, msg_hid, msg_out]
    w2bd = jax.scipy.linalg.block_diag(*[w2[j] for j in range(Ka)]).astype(cd)
    b2 = params["b2"][start_idx:].reshape(1, Ka * msg_out).astype(f32)

    wo1 = params["wo1"]                             # [D + msg_out, n_hid]
    wo1x = wo1[:D].astype(cd)
    wo1a = jnp.tile(wo1[D:], (Ka, 1)).astype(cd)    # folds sum over edge types
    bo1 = params["bo1"].astype(f32)
    wo2 = params["wo2"].astype(cd)
    bo2 = params["bo2"].astype(f32)
    wo3 = params["wo3"].astype(cd)
    bo3 = params["bo3"].astype(f32)

    consts = (rrb, rsb, rrt,
              w1r, w1s, b1, w2bd, b2,
              wo1x, wo1a, bo1, wo2, bo2, wo3, bo3)
    dims = dict(N=N, D=D, E=E, K=K, Ka=Ka, start_idx=start_idx,
                msg_hid=msg_hid, msg_out=msg_out, n_hid=n_hid)
    return consts, dims


def _const_spec(arr):
    zeros = (0,) * arr.ndim
    return pl.BlockSpec(arr.shape, lambda b, c, _z=zeros: _z)


def _default_compute_dtype():
    """bf16 MXU operands (f32 accumulation) on v6e/v7x; f32 elsewhere."""
    try:
        kind = jax.devices()[0].device_kind.lower()
    except Exception:
        return jnp.float32
    if any(tag in kind for tag in ("v6", "v7", "7x", "trillium", "ironwood")):
        return jnp.bfloat16
    return jnp.float32


# ----------------------------- pallas_call wrapper ---------------------------

def _decoder_pallas(flat, rt_big, consts, dims, *, pred_steps, tp_block,
                    compute_dtype):
    """flat: [B, Tp_pad*N, D] f32, rt_big: [B, Tp_blk*E, Ka*msg_out] f32
       -> [B, pred_steps, Tp_pad*N, D] f32."""
    B = flat.shape[0]
    N, D, E = dims["N"], dims["D"], dims["E"]
    Ka, mh, mo, nh = dims["Ka"], dims["msg_hid"], dims["msg_out"], dims["n_hid"]
    tp_pad = flat.shape[1] // N
    chunks = tp_pad // tp_block
    tbn = tp_block * N
    tbe = tp_block * E
    kamh = Ka * mh
    kamo = Ka * mo

    kernel = functools.partial(_decoder_kernel, compute_dtype=compute_dtype,
                               pred_steps=pred_steps)

    in_specs = [
        pl.BlockSpec((1, tbn, D), lambda b, c: (b, c, 0)),        # x chunk
        pl.BlockSpec((1, tbe, kamo), lambda b, c: (b, 0, 0)),     # rel_type (expanded)
    ] + [_const_spec(cst) for cst in consts]
    out_specs = pl.BlockSpec((1, pred_steps, tbn, D),
                             lambda b, c: (b, 0, c, 0))

    # -- advisory cost estimate (per grid step x grid size x pred_steps).
    step_flops = (
        2 * 2 * tbn * D * kamh                       # xr, xs projections
        + 2 * 2 * tbe * tbn * kamh                   # block-diag gathers
        + 2 * tbe * kamh * kamo                      # msg fc2
        + tbe * kamo                                 # rel_type weighting (VPU)
        + 2 * tbn * tbe * kamo                       # aggregation
        + 2 * tbn * (D * nh + kamo * nh + nh * nh + nh * D)   # out MLP
        + tbn * (3 * nh + 2 * D)                     # biases / relu / residual
    )
    flops = int(B * chunks * pred_steps * step_flops)
    const_bytes = sum(int(np.prod(c.shape)) * c.dtype.itemsize for c in consts)
    bytes_accessed = int(flat.size * 4 * (1 + pred_steps)
                         + rt_big.size * 4 + const_bytes)

    # -- explicit VMEM budget (double-buffered blocks + constants + intermediates).
    block_bytes = tbn * D * 4 + tbe * kamo * 4 + pred_steps * tbn * D * 4
    inter_bytes = 8 * (tbn * 2 * kamh + tbe * (kamh + 2 * kamo)
                       + tbn * (kamo + 2 * nh + 2 * D))
    vmem_need = 2 * block_bytes + 2 * const_bytes + inter_bytes
    vmem_limit = int(min(64 * 1024 * 1024, max(16 * 1024 * 1024, 2 * vmem_need)))

    return pl.pallas_call(
        kernel,
        out_shape=jax.ShapeDtypeStruct((B, pred_steps, tp_pad * N, D),
                                       jnp.float32),
        grid=(B, chunks),
        in_specs=in_specs,
        out_specs=out_specs,
        compiler_params=pltpu.CompilerParams(
            dimension_semantics=("parallel", "parallel"),
            vmem_limit_bytes=vmem_limit),
        cost_estimate=pl.CostEstimate(flops=flops, transcendentals=0,
                                      bytes_accessed=bytes_accessed),
    )(flat, rt_big, *consts)


# --------------------------- forward (glue in JAX) --------------------------

def mlp_decoder_forward(inputs, rel_type, rel_rec, rel_send, params,
                        pred_steps=1, skip_first=False,
                        compute_dtype=None, tp_block=8):
    """inputs: [B, N, T, D], rel_type: [B, E, K] -> [B, N, T-1, D]."""
    if compute_dtype is None:
        compute_dtype = _default_compute_dtype()

    B, N, T, D = inputs.shape
    x = jnp.transpose(inputs, (0, 2, 1, 3))          # [B, T, N, D]
    assert pred_steps <= T

    last = x[:, 0::pred_steps]                       # [B, Tp, N, D]
    Tp = last.shape[1]

    # sublane-aligned timestep chunk (Tp_blk * N rows per grid step)
    tp_block = max(8, 8 * (int(tp_block) // 8))
    tp_pad = ((Tp + tp_block - 1) // tp_block) * tp_block

    consts, dims = _prepare_constants(
        rel_rec, rel_send, params, tp_blk=tp_block, skip_first=skip_first,
        compute_dtype=compute_dtype)

    # rel_type pre-expanded on the host: [B, Tp_blk*E, Ka*msg_out]
    start_idx = dims["start_idx"]
    rt_exp = jnp.repeat(rel_type[:, :, start_idx:].astype(jnp.float32),
                        dims["msg_out"], axis=-1)     # [B, E, Ka*msg_out]
    rt_big = jnp.tile(rt_exp, (1, tp_block, 1))       # broadcast over Tp_blk

    flat = last.reshape(B, Tp * N, D).astype(jnp.float32)
    if tp_pad > Tp:                                   # pad timesteps (discarded later)
        flat = jnp.pad(flat, ((0, 0), (0, (tp_pad - Tp) * N), (0, 0)))

    out = _decoder_pallas(flat, rt_big, consts, dims, pred_steps=pred_steps,
                          tp_block=tp_block, compute_dtype=compute_dtype)
    out = out.reshape(B, pred_steps, tp_pad, N, D)[:, :, :Tp]   # drop padding

    output = jnp.zeros((B, Tp * pred_steps, N, D), dtype=jnp.float32)
    for i in range(pred_steps):
        output = output.at[:, i::pred_steps].set(out[:, i])
    pred_all = output[:, :T - 1]
    return jnp.transpose(pred_all, (0, 2, 1, 3))     # [B, N, T-1, D]


# ------------------------------ pure JAX reference ---------------------------

def _single_step_ref(x, rel_type, rel_rec, rel_send, params, skip_first):
    recv = jnp.einsum("en,btnd->bted", rel_rec, x)
    send = jnp.einsum("en,btnd->bted", rel_send, x)
    pre_msg = jnp.concatenate([recv, send], axis=-1)
    K = params["w1"].shape[0]
    msg_out = params["w2"].shape[-1]
    all_msgs = jnp.zeros(pre_msg.shape[:-1] + (msg_out,), jnp.float32)
    for i in range(1 if skip_first else 0, K):
        h = jax.nn.relu(pre_msg @ params["w1"][i] + params["b1"][i])
        m = jax.nn.relu(h @ params["w2"][i] + params["b2"][i])
        all_msgs = all_msgs + m * rel_type[..., i:i + 1]
    agg = jnp.einsum("bted,en->btnd", all_msgs, rel_rec)
    aug = jnp.concatenate([x, agg], axis=-1)
    p = jax.nn.relu(aug @ params["wo1"] + params["bo1"][0])
    p = jax.nn.relu(p @ params["wo2"] + params["bo2"][0])
    p = p @ params["wo3"] + params["bo3"][0]
    return x + p


def mlp_decoder_forward_ref(inputs, rel_type, rel_rec, rel_send, params,
                            pred_steps=1, skip_first=False):
    B, N, T, D = inputs.shape
    E, K = rel_type.shape[1], rel_type.shape[2]
    x = jnp.transpose(inputs, (0, 2, 1, 3))
    last_pred = x[:, 0::pred_steps]
    Tp = last_pred.shape[1]
    rt = jnp.broadcast_to(rel_type[:, None], (B, Tp, E, K))
    preds = []
    for _ in range(pred_steps):
        last_pred = _single_step_ref(last_pred, rt, rel_rec, rel_send,
                                     params, skip_first)
        preds.append(last_pred)
    output = jnp.zeros((B, Tp * pred_steps, N, D), jnp.float32)
    for i, p in enumerate(preds):
        output = output.at[:, i::pred_steps].set(p)
    return jnp.transpose(output[:, :T - 1], (0, 2, 1, 3))


# --------------------------------- main --------------------------------------

def _make_params(key, n_in_node, edge_types, msg_hid, msg_out, n_hid):
    """Deterministic synthetic params, stored as [in, out] matrices."""
    keys = jax.random.split(key, 14)

    def lin(kw, kb, fan_in, fan_out):
        bound = 1.0 / np.sqrt(fan_in)
        w = jax.random.uniform(kw, (fan_in, fan_out), jnp.float32, -bound, bound)
        b = jax.random.uniform(kb, (fan_out,), jnp.float32, -bound, bound)
        return w, b

    w1s, b1s, w2s, b2s = [], [], [], []
    for i in range(edge_types):
        w, b = lin(keys[i], keys[edge_types + i], 2 * n_in_node, msg_hid)
        w1s.append(w); b1s.append(b)
        w, b = lin(keys[2 * edge_types + i], keys[3 * edge_types + i],
                   msg_hid, msg_out)
        w2s.append(w); b2s.append(b)

    wo1, bo1 = lin(keys[8], keys[9], n_in_node + msg_out, n_hid)
    wo2, bo2 = lin(keys[10], keys[11], n_hid, n_hid)
    wo3, bo3 = lin(keys[12], keys[13], n_hid, n_in_node)

    return dict(
        w1=jnp.stack(w1s), b1=jnp.stack(b1s),
        w2=jnp.stack(w2s), b2=jnp.stack(b2s),
        wo1=wo1, bo1=bo1[None, :],
        wo2=wo2, bo2=bo2[None, :],
        wo3=wo3, bo3=bo3[None, :],
    )


if __name__ == "__main__":
    # small shapes: B=2 batches, N=5 atoms, T=8 timesteps, D=4 dims,
    # K=2 edge types, msg_hid=msg_out=n_hid=32, E = N*(N-1) = 20 edges.
    B, N, T, D = 2, 5, 8, 4
    K, msg_hid, msg_out, n_hid = 2, 32, 32, 32
    E = N * (N - 1)

    key = jax.random.PRNGKey(0)
    k_in, k_rt, k_par = jax.random.split(key, 3)

    inputs = jax.random.normal(k_in, (B, N, T, D), jnp.float32)   # [B, N, T, D]
    rel_type = jax.nn.softmax(
        jax.random.normal(k_rt, (B, E, K), jnp.float32), axis=-1)  # [B, E, K]

    # standard NRI off-diagonal one-hot receiver / sender matrices [E, N]
    off_diag = np.ones((N, N)) - np.eye(N)
    rel_rec = jnp.asarray(np.eye(N)[np.where(off_diag)[0]], jnp.float32)
    rel_send = jnp.asarray(np.eye(N)[np.where(off_diag)[1]], jnp.float32)

    params = _make_params(k_par, D, K, msg_hid, msg_out, n_hid)

    ref = mlp_decoder_forward_ref(inputs, rel_type, rel_rec, rel_send, params,
                                  pred_steps=1, skip_first=False)

    # --- f32, skip_first=False (main correctness check) ---
    out = jax.block_until_ready(
        mlp_decoder_forward(inputs, rel_type, rel_rec, rel_send, params,
                            pred_steps=1, skip_first=False,
                            compute_dtype=jnp.float32))
    np.testing.assert_allclose(np.asarray(out), np.asarray(ref),
                               rtol=1e-5, atol=1e-5)
    assert out.shape == (B, N, T - 1, D)

    # --- f32, skip_first=True (exercises the active-edge-type selection) ---
    out_sf = jax.block_until_ready(
        mlp_decoder_forward(inputs, rel_type, rel_rec, rel_send, params,
                            pred_steps=1, skip_first=True,
                            compute_dtype=jnp.float32))
    ref_sf = mlp_decoder_forward_ref(inputs, rel_type, rel_rec, rel_send,
                                     params, pred_steps=1, skip_first=True)
    np.testing.assert_allclose(np.asarray(out_sf), np.asarray(ref_sf),
                               rtol=1e-5, atol=1e-5)

    # --- f32, pred_steps=2 (fused in-kernel recurrence + timestep padding) ---
    out_ps = jax.block_until_ready(
        mlp_decoder_forward(inputs, rel_type, rel_rec, rel_send, params,
                            pred_steps=2, skip_first=False,
                            compute_dtype=jnp.float32))
    ref_ps = mlp_decoder_forward_ref(inputs, rel_type, rel_rec, rel_send,
                                     params, pred_steps=2, skip_first=False)
    np.testing.assert_allclose(np.asarray(out_ps), np.asarray(ref_ps),
                               rtol=1e-5, atol=1e-5)

    # --- bf16 MXU operands / f32 accumulation (v6e / v7x fast path) ---
    out_bf16 = jax.block_until_ready(
        mlp_decoder_forward(inputs, rel_type, rel_rec, rel_send, params,
                            pred_steps=1, skip_first=False,
                            compute_dtype=jnp.bfloat16))
    np.testing.assert_allclose(np.asarray(out_bf16), np.asarray(ref),
                               rtol=5e-2, atol=5e-2)

    # --- auto compute_dtype (bf16 on v6e/v7x, f32 otherwise) ---
    out_auto = jax.block_until_ready(
        mlp_decoder_forward(inputs, rel_type, rel_rec, rel_send, params,
                            pred_steps=1, skip_first=False))
    np.testing.assert_allclose(np.asarray(out_auto), np.asarray(ref),
                               rtol=5e-2, atol=5e-2)

    print("KERNEL_OK")
</pallas_src>

<mosaic_0001>
module attributes {stable_mosaic.version = 11 : i64} {
  func.func @_decoder_kernel(%arg0: i32, %arg1: i32, %arg2: memref<1x40x4xf32, #tpu.memory_space<vmem>>, %arg3: memref<1x160x64xf32, #tpu.memory_space<vmem>>, %arg4: memref<160x40xf32, #tpu.memory_space<vmem>>, %arg5: memref<160x40xf32, #tpu.memory_space<vmem>>, %arg6: memref<40x160xf32, #tpu.memory_space<vmem>>, %arg7: memref<4x64xf32, #tpu.memory_space<vmem>>, %arg8: memref<4x64xf32, #tpu.memory_space<vmem>>, %arg9: memref<1x64xf32, #tpu.memory_space<vmem>>, %arg10: memref<64x64xf32, #tpu.memory_space<vmem>>, %arg11: memref<1x64xf32, #tpu.memory_space<vmem>>, %arg12: memref<4x32xf32, #tpu.memory_space<vmem>>, %arg13: memref<64x32xf32, #tpu.memory_space<vmem>>, %arg14: memref<1x32xf32, #tpu.memory_space<vmem>>, %arg15: memref<32x32xf32, #tpu.memory_space<vmem>>, %arg16: memref<1x32xf32, #tpu.memory_space<vmem>>, %arg17: memref<32x4xf32, #tpu.memory_space<vmem>>, %arg18: memref<1x4xf32, #tpu.memory_space<vmem>>, %arg19: memref<1x1x40x4xf32, #tpu.memory_space<vmem>>) attributes {dimension_semantics = [#tpu.dimension_semantics<parallel>, #tpu.dimension_semantics<parallel>], iteration_bounds = array<i64: 2, 1>, scalar_prefetch = 0 : i64, scratch_operands = 0 : i64, tpu.core_type = #tpu.core_type<tc>, window_params = [{transform_indices = @transform_0, window_bounds = array<i64: 1, 40, 4>}, {transform_indices = @transform_1, window_bounds = array<i64: 1, 160, 64>}, {pipeline_mode = #tpu.pipeline_mode<synchronous>, transform_indices = @transform_2, window_bounds = array<i64: 160, 40>}, {pipeline_mode = #tpu.pipeline_mode<synchronous>, transform_indices = @transform_3, window_bounds = array<i64: 160, 40>}, {pipeline_mode = #tpu.pipeline_mode<synchronous>, transform_indices = @transform_4, window_bounds = array<i64: 40, 160>}, {pipeline_mode = #tpu.pipeline_mode<synchronous>, transform_indices = @transform_5, window_bounds = array<i64: 4, 64>}, {pipeline_mode = #tpu.pipeline_mode<synchronous>, transform_indices = @transform_6, window_bounds = array<i64: 4, 64>}, {pipeline_mode = #tpu.pipeline_mode<synchronous>, transform_indices = @transform_7, window_bounds = array<i64: 1, 64>}, {pipeline_mode = #tpu.pipeline_mode<synchronous>, transform_indices = @transform_8, window_bounds = array<i64: 64, 64>}, {pipeline_mode = #tpu.pipeline_mode<synchronous>, transform_indices = @transform_9, window_bounds = array<i64: 1, 64>}, {pipeline_mode = #tpu.pipeline_mode<synchronous>, transform_indices = @transform_10, window_bounds = array<i64: 4, 32>}, {pipeline_mode = #tpu.pipeline_mode<synchronous>, transform_indices = @transform_11, window_bounds = array<i64: 64, 32>}, {pipeline_mode = #tpu.pipeline_mode<synchronous>, transform_indices = @transform_12, window_bounds = array<i64: 1, 32>}, {pipeline_mode = #tpu.pipeline_mode<synchronous>, transform_indices = @transform_13, window_bounds = array<i64: 32, 32>}, {pipeline_mode = #tpu.pipeline_mode<synchronous>, transform_indices = @transform_14, window_bounds = array<i64: 1, 32>}, {pipeline_mode = #tpu.pipeline_mode<synchronous>, transform_indices = @transform_15, window_bounds = array<i64: 32, 4>}, {pipeline_mode = #tpu.pipeline_mode<synchronous>, transform_indices = @transform_16, window_bounds = array<i64: 1, 4>}, {transform_indices = @transform_17, window_bounds = array<i64: 1, 1, 40, 4>}]} {
    %c0 = arith.constant 0 : index
    %c0_0 = arith.constant 0 : index
    %c0_1 = arith.constant 0 : index
    %0 = vector.load %arg3[%c0, %c0_0, %c0_1] : memref<1x160x64xf32, #tpu.memory_space<vmem>>, vector<1x160x64xf32>
    %1 = vector.shape_cast %0 : vector<1x160x64xf32> to vector<160x64xf32>
    %c0_2 = arith.constant 0 : index
    %c0_3 = arith.constant 0 : index
    %2 = vector.load %arg4[%c0_2, %c0_3] : memref<160x40xf32, #tpu.memory_space<vmem>>, vector<160x40xf32>
    %c0_4 = arith.constant 0 : index
    %c0_5 = arith.constant 0 : index
    %3 = vector.load %arg5[%c0_4, %c0_5] : memref<160x40xf32, #tpu.memory_space<vmem>>, vector<160x40xf32>
    %c0_6 = arith.constant 0 : index
    %c0_7 = arith.constant 0 : index
    %4 = vector.load %arg6[%c0_6, %c0_7] : memref<40x160xf32, #tpu.memory_space<vmem>>, vector<40x160xf32>
    %c0_8 = arith.constant 0 : index
    %c0_9 = arith.constant 0 : index
    %5 = vector.load %arg7[%c0_8, %c0_9] : memref<4x64xf32, #tpu.memory_space<vmem>>, vector<4x64xf32>
    %c0_10 = arith.constant 0 : index
    %c0_11 = arith.constant 0 : index
    %6 = vector.load %arg8[%c0_10, %c0_11] : memref<4x64xf32, #tpu.memory_space<vmem>>, vector<4x64xf32>
    %c0_12 = arith.constant 0 : index
    %c0_13 = arith.constant 0 : index
    %7 = vector.load %arg9[%c0_12, %c0_13] : memref<1x64xf32, #tpu.memory_space<vmem>>, vector<1x64xf32>
    %c0_14 = arith.constant 0 : index
    %c0_15 = arith.constant 0 : index
    %8 = vector.load %arg10[%c0_14, %c0_15] : memref<64x64xf32, #tpu.memory_space<vmem>>, vector<64x64xf32>
    %c0_16 = arith.constant 0 : index
    %c0_17 = arith.constant 0 : index
    %9 = vector.load %arg11[%c0_16, %c0_17] : memref<1x64xf32, #tpu.memory_space<vmem>>, vector<1x64xf32>
    %c0_18 = arith.constant 0 : index
    %c0_19 = arith.constant 0 : index
    %10 = vector.load %arg12[%c0_18, %c0_19] : memref<4x32xf32, #tpu.memory_space<vmem>>, vector<4x32xf32>
    %c0_20 = arith.constant 0 : index
    %c0_21 = arith.constant 0 : index
    %11 = vector.load %arg13[%c0_20, %c0_21] : memref<64x32xf32, #tpu.memory_space<vmem>>, vector<64x32xf32>
    %c0_22 = arith.constant 0 : index
    %c0_23 = arith.constant 0 : index
    %12 = vector.load %arg14[%c0_22, %c0_23] : memref<1x32xf32, #tpu.memory_space<vmem>>, vector<1x32xf32>
    %c0_24 = arith.constant 0 : index
    %c0_25 = arith.constant 0 : index
    %13 = vector.load %arg15[%c0_24, %c0_25] : memref<32x32xf32, #tpu.memory_space<vmem>>, vector<32x32xf32>
    %c0_26 = arith.constant 0 : index
    %c0_27 = arith.constant 0 : index
    %14 = vector.load %arg16[%c0_26, %c0_27] : memref<1x32xf32, #tpu.memory_space<vmem>>, vector<1x32xf32>
    %c0_28 = arith.constant 0 : index
    %c0_29 = arith.constant 0 : index
    %15 = vector.load %arg17[%c0_28, %c0_29] : memref<32x4xf32, #tpu.memory_space<vmem>>, vector<32x4xf32>
    %c0_30 = arith.constant 0 : index
    %c0_31 = arith.constant 0 : index
    %16 = vector.load %arg18[%c0_30, %c0_31] : memref<1x4xf32, #tpu.memory_space<vmem>>, vector<1x4xf32>
    %c0_32 = arith.constant 0 : index
    %c0_33 = arith.constant 0 : index
    %c0_34 = arith.constant 0 : index
    %17 = vector.load %arg2[%c0_32, %c0_33, %c0_34] : memref<1x40x4xf32, #tpu.memory_space<vmem>>, vector<1x40x4xf32>
    %18 = vector.shape_cast %17 : vector<1x40x4xf32> to vector<40x4xf32>
    %cst = arith.constant dense<0.000000e+00> : vector<40x64xf32>
    %19 = tpu.matmul %18, %5, %cst {dimension_numbers = #tpu.dot_dimension_numbers<[1], [0], [0], [1], [0, 0, 1, 1], [], []>} : vector<40x4xf32>, vector<4x64xf32>, vector<40x64xf32> -> vector<40x64xf32>
    %cst_35 = arith.constant dense<0.000000e+00> : vector<40x64xf32>
    %20 = tpu.matmul %18, %6, %cst_35 {dimension_numbers = #tpu.dot_dimension_numbers<[1], [0], [0], [1], [0, 0, 1, 1], [], []>} : vector<40x4xf32>, vector<4x64xf32>, vector<40x64xf32> -> vector<40x64xf32>
    %cst_36 = arith.constant dense<0.000000e+00> : vector<160x64xf32>
    %21 = tpu.matmul %2, %19, %cst_36 {dimension_numbers = #tpu.dot_dimension_numbers<[1], [0], [0], [1], [0, 0, 1, 1], [], []>} : vector<160x40xf32>, vector<40x64xf32>, vector<160x64xf32> -> vector<160x64xf32>
    %cst_37 = arith.constant dense<0.000000e+00> : vector<160x64xf32>
    %22 = tpu.matmul %3, %20, %cst_37 {dimension_numbers = #tpu.dot_dimension_numbers<[1], [0], [0], [1], [0, 0, 1, 1], [], []>} : vector<160x40xf32>, vector<40x64xf32>, vector<160x64xf32> -> vector<160x64xf32>
    %23 = arith.addf %21, %22 : vector<160x64xf32>
    %24 = vector.broadcast %7 : vector<1x64xf32> to vector<160x64xf32>
    %25 = arith.addf %23, %24 : vector<160x64xf32>
    %cst_38 = arith.constant 0.000000e+00 : f32
    %26 = vector.broadcast %cst_38 : f32 to vector<160x64xf32>
    %27 = arith.maximumf %25, %26 : vector<160x64xf32>
    %cst_39 = arith.constant dense<0.000000e+00> : vector<160x64xf32>
    %28 = tpu.matmul %27, %8, %cst_39 {dimension_numbers = #tpu.dot_dimension_numbers<[1], [0], [0], [1], [0, 0, 1, 1], [], []>} : vector<160x64xf32>, vector<64x64xf32>, vector<160x64xf32> -> vector<160x64xf32>
    %29 = vector.broadcast %9 : vector<1x64xf32> to vector<160x64xf32>
    %30 = arith.addf %28, %29 : vector<160x64xf32>
    %cst_40 = arith.constant 0.000000e+00 : f32
    %31 = vector.broadcast %cst_40 : f32 to vector<160x64xf32>
    %32 = arith.maximumf %30, %31 : vector<160x64xf32>
    %33 = arith.mulf %32, %1 : vector<160x64xf32>
    %cst_41 = arith.constant dense<0.000000e+00> : vector<40x64xf32>
    %34 = tpu.matmul %4, %33, %cst_41 {dimension_numbers = #tpu.dot_dimension_numbers<[1], [0], [0], [1], [0, 0, 1, 1], [], []>} : vector<40x160xf32>, vector<160x64xf32>, vector<40x64xf32> -> vector<40x64xf32>
    %cst_42 = arith.constant dense<0.000000e+00> : vector<40x32xf32>
    %35 = tpu.matmul %18, %10, %cst_42 {dimension_numbers = #tpu.dot_dimension_numbers<[1], [0], [0], [1], [0, 0, 1, 1], [], []>} : vector<40x4xf32>, vector<4x32xf32>, vector<40x32xf32> -> vector<40x32xf32>
    %cst_43 = arith.constant dense<0.000000e+00> : vector<40x32xf32>
    %36 = tpu.matmul %34, %11, %cst_43 {dimension_numbers = #tpu.dot_dimension_numbers<[1], [0], [0], [1], [0, 0, 1, 1], [], []>} : vector<40x64xf32>, vector<64x32xf32>, vector<40x32xf32> -> vector<40x32xf32>
    %37 = arith.addf %35, %36 : vector<40x32xf32>
    %38 = vector.broadcast %12 : vector<1x32xf32> to vector<40x32xf32>
    %39 = arith.addf %37, %38 : vector<40x32xf32>
    %cst_44 = arith.constant 0.000000e+00 : f32
    %40 = vector.broadcast %cst_44 : f32 to vector<40x32xf32>
    %41 = arith.maximumf %39, %40 : vector<40x32xf32>
    %cst_45 = arith.constant dense<0.000000e+00> : vector<40x32xf32>
    %42 = tpu.matmul %41, %13, %cst_45 {dimension_numbers = #tpu.dot_dimension_numbers<[1], [0], [0], [1], [0, 0, 1, 1], [], []>} : vector<40x32xf32>, vector<32x32xf32>, vector<40x32xf32> -> vector<40x32xf32>
    %43 = vector.broadcast %14 : vector<1x32xf32> to vector<40x32xf32>
    %44 = arith.addf %42, %43 : vector<40x32xf32>
    %cst_46 = arith.constant 0.000000e+00 : f32
    %45 = vector.broadcast %cst_46 : f32 to vector<40x32xf32>
    %46 = arith.maximumf %44, %45 : vector<40x32xf32>
    %cst_47 = arith.constant dense<0.000000e+00> : vector<40x4xf32>
    %47 = tpu.matmul %46, %15, %cst_47 {dimension_numbers = #tpu.dot_dimension_numbers<[1], [0], [0], [1], [0, 0, 1, 1], [], []>} : vector<40x32xf32>, vector<32x4xf32>, vector<40x4xf32> -> vector<40x4xf32>
    %48 = vector.broadcast %16 : vector<1x4xf32> to vector<40x4xf32>
    %49 = arith.addf %47, %48 : vector<40x4xf32>
    %50 = arith.addf %18, %49 : vector<40x4xf32>
    %c0_48 = arith.constant 0 : index
    %c0_49 = arith.constant 0 : index
    %c0_50 = arith.constant 0 : index
    %c0_51 = arith.constant 0 : index
    %51 = vector.load %arg19[%c0_48, %c0_49, %c0_50, %c0_51] : memref<1x1x40x4xf32, #tpu.memory_space<vmem>>, vector<1x1x40x4xf32>
    %52 = vector.shape_cast %51 : vector<1x1x40x4xf32> to vector<40x4xf32>
    %53 = vector.shape_cast %50 : vector<40x4xf32> to vector<1x1x40x4xf32>
    tpu.vector_store %arg19[%c0_48, %c0_49, %c0_50, %c0_51], %53 {strides = array<i32>} : memref<1x1x40x4xf32, #tpu.memory_space<vmem>>, vector<1x1x40x4xf32>,
    return
  }
  func.func @transform_0(%arg0: i32, %arg1: i32) -> (i32, i32, i32) {
    %c0_i32 = arith.constant 0 : i32
    %c0_i32_0 = arith.constant 0 : i32
    return %arg0, %arg1, %c0_i32 : i32, i32, i32
  }
  func.func @transform_1(%arg0: i32, %arg1: i32) -> (i32, i32, i32) {
    %c0_i32 = arith.constant 0 : i32
    %c0_i32_0 = arith.constant 0 : i32
    %c0_i32_1 = arith.constant 0 : i32
    return %arg0, %c0_i32, %c0_i32_0 : i32, i32, i32
  }
  func.func @transform_2(%arg0: i32, %arg1: i32) -> (i32, i32) {
    %c0_i32 = arith.constant 0 : i32
    %c0_i32_0 = arith.constant 0 : i32
    %c0_i32_1 = arith.constant 0 : i32
    return %c0_i32, %c0_i32_0 : i32, i32
  }
  func.func @transform_3(%arg0: i32, %arg1: i32) -> (i32, i32) {
    %c0_i32 = arith.constant 0 : i32
    %c0_i32_0 = arith.constant 0 : i32
    %c0_i32_1 = arith.constant 0 : i32
    return %c0_i32, %c0_i32_0 : i32, i32
  }
  func.func @transform_4(%arg0: i32, %arg1: i32) -> (i32, i32) {
    %c0_i32 = arith.constant 0 : i32
    %c0_i32_0 = arith.constant 0 : i32
    %c0_i32_1 = arith.constant 0 : i32
    return %c0_i32, %c0_i32_0 : i32, i32
  }
  func.func @transform_5(%arg0: i32, %arg1: i32) -> (i32, i32) {
    %c0_i32 = arith.constant 0 : i32
    %c0_i32_0 = arith.constant 0 : i32
    %c0_i32_1 = arith.constant 0 : i32
    return %c0_i32, %c0_i32_0 : i32, i32
  }
  func.func @transform_6(%arg0: i32, %arg1: i32) -> (i32, i32) {
    %c0_i32 = arith.constant 0 : i32
    %c0_i32_0 = arith.constant 0 : i32
    %c0_i32_1 = arith.constant 0 : i32
    return %c0_i32, %c0_i32_0 : i32, i32
  }
  func.func @transform_7(%arg0: i32, %arg1: i32) -> (i32, i32) {
    %c0_i32 = arith.constant 0 : i32
    %c0_i32_0 = arith.constant 0 : i32
    %c0_i32_1 = arith.constant 0 : i32
    return %c0_i32, %c0_i32_0 : i32, i32
  }
  func.func @transform_8(%arg0: i32, %arg1: i32) -> (i32, i32) {
    %c0_i32 = arith.constant 0 : i32
    %c0_i32_0 = arith.constant 0 : i32
    %c0_i32_1 = arith.constant 0 : i32
    return %c0_i32, %c0_i32_0 : i32, i32
  }
  func.func @transform_9(%arg0: i32, %arg1: i32) -> (i32, i32) {
    %c0_i32 = arith.constant 0 : i32
    %c0_i32_0 = arith.constant 0 : i32
    %c0_i32_1 = arith.constant 0 : i32
    return %c0_i32, %c0_i32_0 : i32, i32
  }
  func.func @transform_10(%arg0: i32, %arg1: i32) -> (i32, i32) {
    %c0_i32 = arith.constant 0 : i32
    %c0_i32_0 = arith.constant 0 : i32
    %c0_i32_1 = arith.constant 0 : i32
    return %c0_i32, %c0_i32_0 : i32, i32
  }
  func.func @transform_11(%arg0: i32, %arg1: i32) -> (i32, i32) {
    %c0_i32 = arith.constant 0 : i32
    %c0_i32_0 = arith.constant 0 : i32
    %c0_i32_1 = arith.constant 0 : i32
    return %c0_i32, %c0_i32_0 : i32, i32
  }
  func.func @transform_12(%arg0: i32, %arg1: i32) -> (i32, i32) {
    %c0_i32 = arith.constant 0 : i32
    %c0_i32_0 = arith.constant 0 : i32
    %c0_i32_1 = arith.constant 0 : i32
    return %c0_i32, %c0_i32_0 : i32, i32
  }
  func.func @transform_13(%arg0: i32, %arg1: i32) -> (i32, i32) {
    %c0_i32 = arith.constant 0 : i32
    %c0_i32_0 = arith.constant 0 : i32
    %c0_i32_1 = arith.constant 0 : i32
    return %c0_i32, %c0_i32_0 : i32, i32
  }
  func.func @transform_14(%arg0: i32, %arg1: i32) -> (i32, i32) {
    %c0_i32 = arith.constant 0 : i32
    %c0_i32_0 = arith.constant 0 : i32
    %c0_i32_1 = arith.constant 0 : i32
    return %c0_i32, %c0_i32_0 : i32, i32
  }
  func.func @transform_15(%arg0: i32, %arg1: i32) -> (i32, i32) {
    %c0_i32 = arith.constant 0 : i32
    %c0_i32_0 = arith.constant 0 : i32
    %c0_i32_1 = arith.constant 0 : i32
    return %c0_i32, %c0_i32_0 : i32, i32
  }
  func.func @transform_16(%arg0: i32, %arg1: i32) -> (i32, i32) {
    %c0_i32 = arith.constant 0 : i32
    %c0_i32_0 = arith.constant 0 : i32
    %c0_i32_1 = arith.constant 0 : i32
    return %c0_i32, %c0_i32_0 : i32, i32
  }
  func.func @transform_17(%arg0: i32, %arg1: i32) -> (i32, i32, i32, i32) {
    %c0_i32 = arith.constant 0 : i32
    %c0_i32_0 = arith.constant 0 : i32
    %c0_i32_1 = arith.constant 0 : i32
    return %arg0, %c0_i32, %arg1, %c0_i32_0 : i32, i32, i32, i32
  }
}

</mosaic_0001>

<llo_original>
// kernel: tpu_custom_call.1
$region0: #{tpu_custom_call.1}
  #allocation0 [shape = 'u32[]', space=smem, size = 0x4, offset = 0x4, fixed_abs, tag = 'smem constant byte address 0x4 - core index']
  #allocation1 [shape = 'u32[72,128]{1,0:T(1,128)}', space=vmem, size = 0x9000, scoped, tag = 'internal scratch']
  %s0 = inlined_call_operand.vmem [shape: f32[2,40,4], index: 0, kind: input, shape index: {}]
  %s1 = inlined_call_operand.vmem [shape: f32[2,160,64], index: 1, kind: input, shape index: {}]
  %s2 = inlined_call_operand.vmem [shape: f32[160,40], index: 2, kind: input, shape index: {}]
  %s3 = inlined_call_operand.vmem [shape: f32[160,40], index: 3, kind: input, shape index: {}]
  %s4 = inlined_call_operand.vmem [shape: f32[40,160], index: 4, kind: input, shape index: {}]
  %s5 = inlined_call_operand.vmem [shape: f32[4,64], index: 5, kind: input, shape index: {}]
  %s6 = inlined_call_operand.vmem [shape: f32[4,64], index: 6, kind: input, shape index: {}]
  %s7 = inlined_call_operand.vmem [shape: f32[1,64], index: 7, kind: input, shape index: {}]
  %s8 = inlined_call_operand.vmem [shape: f32[64,64], index: 8, kind: input, shape index: {}]
  %s9 = inlined_call_operand.vmem [shape: f32[1,64], index: 9, kind: input, shape index: {}]
  %s10 = inlined_call_operand.vmem [shape: f32[4,32], index: 10, kind: input, shape index: {}]
  %s11 = inlined_call_operand.vmem [shape: f32[64,32], index: 11, kind: input, shape index: {}]
  %s12 = inlined_call_operand.vmem [shape: f32[1,32], index: 12, kind: input, shape index: {}]
  %s13 = inlined_call_operand.vmem [shape: f32[32,32], index: 13, kind: input, shape index: {}]
  %s14 = inlined_call_operand.vmem [shape: f32[1,32], index: 14, kind: input, shape index: {}]
  %s15 = inlined_call_operand.vmem [shape: f32[32,4], index: 15, kind: input, shape index: {}]
  %s16 = inlined_call_operand.vmem [shape: f32[1,4], index: 16, kind: input, shape index: {}]
  %s17 = inlined_call_operand.vmem [shape: f32[2,1,40,4], index: 17, kind: output, shape index: {}]
  %s18 = sld [smem:[#allocation0]]
  $region101: #{tpu_custom_call.1} parent=0
    _
  %s20 = ssub.s32 1, %s18
  %s21 = scalar_select 0, %s20, %s18
  loop: start=0, step=1, limit=4
  $region2: #{tpu_custom_call.1} parent=0 // loop_pre_header
    _
  $region3: #{tpu_custom_call.1} parent=0 // loop_header
    %s23 = sphi 0, %s27
    %p24 = scmp.ge.s32.totalorder %s23, 4
    %s30 = sphi 0, %s42
    %s31 = sphi 0, %s38
    %s32 = sphi 0, %s30
    %s33 = sphi 0, %s31
    %s34 = sphi 0, %s32
    %s35 = sphi 0, %s33
    %s47 = sphi 0, %s49
    %s50 = sphi 0, %s47
    %s51 = sphi 0, %s50
    %s67 = sphi 0, %s51
    %s73 = sphi 0, %s75
    %s76 = sphi 0, %s73
    %s77 = sphi 0, %s76
    %s93 = sphi 0, %s77
    %s97 = sphi 0, %s97
    %s99 = sphi 0, %s97
    %s100 = sphi 0, %s99
    %s114 = sphi 0, %s100
    %s118 = sphi 0, %s118
    %s120 = sphi 0, %s118
    %s121 = sphi 0, %s120
    %s135 = sphi 0, %s121
    %s139 = sphi 0, %s139
    %s141 = sphi 0, %s139
    %s142 = sphi 0, %s141
    %s156 = sphi 0, %s142
    %s160 = sphi 0, %s160
    %s162 = sphi 0, %s160
    %s163 = sphi 0, %s162
    %s177 = sphi 0, %s163
    %s181 = sphi 0, %s181
    %s183 = sphi 0, %s181
    %s184 = sphi 0, %s183
    %s198 = sphi 0, %s184
    %s202 = sphi 0, %s202
    %s204 = sphi 0, %s202
    %s205 = sphi 0, %s204
    %s219 = sphi 0, %s205
    %s223 = sphi 0, %s223
    %s225 = sphi 0, %s223
    %s226 = sphi 0, %s225
    %s240 = sphi 0, %s226
    %s244 = sphi 0, %s244
    %s246 = sphi 0, %s244
    %s247 = sphi 0, %s246
    %s261 = sphi 0, %s247
    %s265 = sphi 0, %s265
    %s267 = sphi 0, %s265
    %s268 = sphi 0, %s267
    %s282 = sphi 0, %s268
    %s286 = sphi 0, %s286
    %s288 = sphi 0, %s286
    %s289 = sphi 0, %s288
    %s303 = sphi 0, %s289
    %s307 = sphi 0, %s307
    %s309 = sphi 0, %s307
    %s310 = sphi 0, %s309
    %s324 = sphi 0, %s310
    %s328 = sphi 0, %s328
    %s330 = sphi 0, %s328
    %s331 = sphi 0, %s330
    %s345 = sphi 0, %s331
    %s349 = sphi 0, %s349
    %s351 = sphi 0, %s349
    %s352 = sphi 0, %s351
    %s366 = sphi 0, %s352
    %s370 = sphi 0, %s370
    %s372 = sphi 0, %s370
    %s373 = sphi 0, %s372
    %s387 = sphi 0, %s373
    %s391 = sphi 0, %s391
    %s393 = sphi 0, %s391
    %s394 = sphi 0, %s393
    %s408 = sphi 0, %s394
    %s416 = sphi 0, %s418
    %s419 = sphi 0, %s416
    %s420 = sphi 0, %s419
    %s436 = sphi 0, %s420
  $region4: #{tpu_custom_call.1} parent=0 // loop_header_branch
    %26 = sbr.rel (%p24) target = $region8
  $region5: #{tpu_custom_call.1} parent=0 // loop_body
    %s28 = ssub.s32 %s23, 1
    %s29 = ssub.s32 %s23, 2
    %s36 = sadd.s32 1, %s31
    %p37 = scmp.ge.s32.totalorder %s36, 1
    %s38 = scalar_select %p37, 0, %s36
    %s39 = sadd.s32 1, %s30
    %s40 = scalar_select %p37, %s39, %s30
    %p41 = scmp.ge.s32.totalorder %s40, 2
    %s42 = scalar_select %p41, 0, %s40
    %s43 = ssub.s32 %s30, %s42
    %s44 = ssub.s32 %s31, %s38
    %s45 = sor.u32 %s43, %s44
    %p46 = scmp.eq.s32.totalorder %s45, 0
    %s48 = sadd.s32 %s47, 1
    %s49 = scalar_select %p46, %s47, %s48
    %p52 = pneg %p46
    %p53 = scmp.eq.s32.totalorder %s23, 1
    %p54 = por %p52, %p53
    %p55 = scmp.ne.s32.totalorder %s47, %s50
    %p56 = scmp.eq.s32.totalorder %s23, 0
    %p57 = por %p55, %p56
    %p58 = scmp.ne.s32.totalorder %s47, %s50
    %p59 = scmp.eq.s32.totalorder %s28, 1
    %p60 = por %p58, %p59
    %p61 = scmp.ne.s32.totalorder %s50, %s51
    %p62 = scmp.eq.s32.totalorder %s28, 0
    %p63 = por %p61, %p62
    %p64 = scmp.ne.s32.totalorder %s50, %s51
    %p65 = scmp.eq.s32.totalorder %s29, 1
    %p66 = por %p64, %p65
    %p68 = scmp.ne.s32.totalorder %s51, %s67
    %p69 = scmp.eq.s32.totalorder %s29, 0
    %p70 = por %p68, %p69
    %s71 = ssub.s32 %s30, %s42
    %p72 = scmp.eq.s32.totalorder %s71, 0
    %s74 = sadd.s32 %s73, 1
    %s75 = scalar_select %p72, %s73, %s74
    %p78 = pneg %p72
    %p79 = scmp.eq.s32.totalorder %s23, 1
    %p80 = por %p78, %p79
    %p81 = scmp.ne.s32.totalorder %s73, %s76
    %p82 = scmp.eq.s32.totalorder %s23, 0
    %p83 = por %p81, %p82
    %p84 = scmp.ne.s32.totalorder %s73, %s76
    %p85 = scmp.eq.s32.totalorder %s28, 1
    %p86 = por %p84, %p85
    %p87 = scmp.ne.s32.totalorder %s76, %s77
    %p88 = scmp.eq.s32.totalorder %s28, 0
    %p89 = por %p87, %p88
    %p90 = scmp.ne.s32.totalorder %s76, %s77
    %p91 = scmp.eq.s32.totalorder %s29, 1
    %p92 = por %p90, %p91
    %p94 = scmp.ne.s32.totalorder %s77, %s93
    %p95 = scmp.eq.s32.totalorder %s29, 0
    %p96 = por %p94, %p95
    %s98 = sadd.s32 %s97, 1
    %p101 = scmp.eq.s32.totalorder %s23, 1
    %p102 = scmp.ne.s32.totalorder %s97, %s99
    %p103 = scmp.eq.s32.totalorder %s23, 0
    %p104 = por %p102, %p103
    %p105 = scmp.ne.s32.totalorder %s97, %s99
    %p106 = scmp.eq.s32.totalorder %s28, 1
    %p107 = por %p105, %p106
    %p108 = scmp.ne.s32.totalorder %s99, %s100
    %p109 = scmp.eq.s32.totalorder %s28, 0
    %p110 = por %p108, %p109
    %p111 = scmp.ne.s32.totalorder %s99, %s100
    %p112 = scmp.eq.s32.totalorder %s29, 1
    %p113 = por %p111, %p112
    %p115 = scmp.ne.s32.totalorder %s100, %s114
    %p116 = scmp.eq.s32.totalorder %s29, 0
    %p117 = por %p115, %p116
    %s119 = sadd.s32 %s118, 1
    %p122 = scmp.eq.s32.totalorder %s23, 1
    %p123 = scmp.ne.s32.totalorder %s118, %s120
    %p124 = scmp.eq.s32.totalorder %s23, 0
    %p125 = por %p123, %p124
    %p126 = scmp.ne.s32.totalorder %s118, %s120
    %p127 = scmp.eq.s32.totalorder %s28, 1
    %p128 = por %p126, %p127
    %p129 = scmp.ne.s32.totalorder %s120, %s121
    %p130 = scmp.eq.s32.totalorder %s28, 0
    %p131 = por %p129, %p130
    %p132 = scmp.ne.s32.totalorder %s120, %s121
    %p133 = scmp.eq.s32.totalorder %s29, 1
    %p134 = por %p132, %p133
    %p136 = scmp.ne.s32.totalorder %s121, %s135
    %p137 = scmp.eq.s32.totalorder %s29, 0
    %p138 = por %p136, %p137
    %s140 = sadd.s32 %s139, 1
    %p143 = scmp.eq.s32.totalorder %s23, 1
    %p144 = scmp.ne.s32.totalorder %s139, %s141
    %p145 = scmp.eq.s32.totalorder %s23, 0
    %p146 = por %p144, %p145
    %p147 = scmp.ne.s32.totalorder %s139, %s141
    %p148 = scmp.eq.s32.totalorder %s28, 1
    %p149 = por %p147, %p148
    %p150 = scmp.ne.s32.totalorder %s141, %s142
    %p151 = scmp.eq.s32.totalorder %s28, 0
    %p152 = por %p150, %p151
    %p153 = scmp.ne.s32.totalorder %s141, %s142
    %p154 = scmp.eq.s32.totalorder %s29, 1
    %p155 = por %p153, %p154
    %p157 = scmp.ne.s32.totalorder %s142, %s156
    %p158 = scmp.eq.s32.totalorder %s29, 0
    %p159 = por %p157, %p158
    %s161 = sadd.s32 %s160, 1
    %p164 = scmp.eq.s32.totalorder %s23, 1
    %p165 = scmp.ne.s32.totalorder %s160, %s162
    %p166 = scmp.eq.s32.totalorder %s23, 0
    %p167 = por %p165, %p166
    %p168 = scmp.ne.s32.totalorder %s160, %s162
    %p169 = scmp.eq.s32.totalorder %s28, 1
    %p170 = por %p168, %p169
    %p171 = scmp.ne.s32.totalorder %s162, %s163
    %p172 = scmp.eq.s32.totalorder %s28, 0
    %p173 = por %p171, %p172
    %p174 = scmp.ne.s32.totalorder %s162, %s163
    %p175 = scmp.eq.s32.totalorder %s29, 1
    %p176 = por %p174, %p175
    %p178 = scmp.ne.s32.totalorder %s163, %s177
    %p179 = scmp.eq.s32.totalorder %s29, 0
    %p180 = por %p178, %p179
    %s182 = sadd.s32 %s181, 1
    %p185 = scmp.eq.s32.totalorder %s23, 1
    %p186 = scmp.ne.s32.totalorder %s181, %s183
    %p187 = scmp.eq.s32.totalorder %s23, 0
    %p188 = por %p186, %p187
    %p189 = scmp.ne.s32.totalorder %s181, %s183
    %p190 = scmp.eq.s32.totalorder %s28, 1
    %p191 = por %p189, %p190
    %p192 = scmp.ne.s32.totalorder %s183, %s184
    %p193 = scmp.eq.s32.totalorder %s28, 0
    %p194 = por %p192, %p193
    %p195 = scmp.ne.s32.totalorder %s183, %s184
    %p196 = scmp.eq.s32.totalorder %s29, 1
    %p197 = por %p195, %p196
    %p199 = scmp.ne.s32.totalorder %s184, %s198
    %p200 = scmp.eq.s32.totalorder %s29, 0
    %p201 = por %p199, %p200
    %s203 = sadd.s32 %s202, 1
    %p206 = scmp.eq.s32.totalorder %s23, 1
    %p207 = scmp.ne.s32.totalorder %s202, %s204
    %p208 = scmp.eq.s32.totalorder %s23, 0
    %p209 = por %p207, %p208
    %p210 = scmp.ne.s32.totalorder %s202, %s204
    %p211 = scmp.eq.s32.totalorder %s28, 1
    %p212 = por %p210, %p211
    %p213 = scmp.ne.s32.totalorder %s204, %s205
    %p214 = scmp.eq.s32.totalorder %s28, 0
    %p215 = por %p213, %p214
    %p216 = scmp.ne.s32.totalorder %s204, %s205
    %p217 = scmp.eq.s32.totalorder %s29, 1
    %p218 = por %p216, %p217
    %p220 = scmp.ne.s32.totalorder %s205, %s219
    %p221 = scmp.eq.s32.totalorder %s29, 0
    %p222 = por %p220, %p221
    %s224 = sadd.s32 %s223, 1
    %p227 = scmp.eq.s32.totalorder %s23, 1
    %p228 = scmp.ne.s32.totalorder %s223, %s225
    %p229 = scmp.eq.s32.totalorder %s23, 0
    %p230 = por %p228, %p229
    %p231 = scmp.ne.s32.totalorder %s223, %s225
    %p232 = scmp.eq.s32.totalorder %s28, 1
    %p233 = por %p231, %p232
    %p234 = scmp.ne.s32.totalorder %s225, %s226
    %p235 = scmp.eq.s32.totalorder %s28, 0
    %p236 = por %p234, %p235
    %p237 = scmp.ne.s32.totalorder %s225, %s226
    %p238 = scmp.eq.s32.totalorder %s29, 1
    %p239 = por %p237, %p238
    %p241 = scmp.ne.s32.totalorder %s226, %s240
    %p242 = scmp.eq.s32.totalorder %s29, 0
    %p243 = por %p241, %p242
    %s245 = sadd.s32 %s244, 1
    %p248 = scmp.eq.s32.totalorder %s23, 1
    %p249 = scmp.ne.s32.totalorder %s244, %s246
    %p250 = scmp.eq.s32.totalorder %s23, 0
    %p251 = por %p249, %p250
    %p252 = scmp.ne.s32.totalorder %s244, %s246
    %p253 = scmp.eq.s32.totalorder %s28, 1
    %p254 = por %p252, %p253
    %p255 = scmp.ne.s32.totalorder %s246, %s247
    %p256 = scmp.eq.s32.totalorder %s28, 0
    %p257 = por %p255, %p256
    %p258 = scmp.ne.s32.totalorder %s246, %s247
    %p259 = scmp.eq.s32.totalorder %s29, 1
    %p260 = por %p258, %p259
    %p262 = scmp.ne.s32.totalorder %s247, %s261
    %p263 = scmp.eq.s32.totalorder %s29, 0
    %p264 = por %p262, %p263
    %s266 = sadd.s32 %s265, 1
    %p269 = scmp.eq.s32.totalorder %s23, 1
    %p270 = scmp.ne.s32.totalorder %s265, %s267
    %p271 = scmp.eq.s32.totalorder %s23, 0
    %p272 = por %p270, %p271
    %p273 = scmp.ne.s32.totalorder %s265, %s267
    %p274 = scmp.eq.s32.totalorder %s28, 1
    %p275 = por %p273, %p274
    %p276 = scmp.ne.s32.totalorder %s267, %s268
    %p277 = scmp.eq.s32.totalorder %s28, 0
    %p278 = por %p276, %p277
    %p279 = scmp.ne.s32.totalorder %s267, %s268
    %p280 = scmp.eq.s32.totalorder %s29, 1
    %p281 = por %p279, %p280
    %p283 = scmp.ne.s32.totalorder %s268, %s282
    %p284 = scmp.eq.s32.totalorder %s29, 0
    %p285 = por %p283, %p284
    %s287 = sadd.s32 %s286, 1
    %p290 = scmp.eq.s32.totalorder %s23, 1
    %p291 = scmp.ne.s32.totalorder %s286, %s288
    %p292 = scmp.eq.s32.totalorder %s23, 0
    %p293 = por %p291, %p292
    %p294 = scmp.ne.s32.totalorder %s286, %s288
    %p295 = scmp.eq.s32.totalorder %s28, 1
    %p296 = por %p294, %p295
    %p297 = scmp.ne.s32.totalorder %s288, %s289
    %p298 = scmp.eq.s32.totalorder %s28, 0
    %p299 = por %p297, %p298
    %p300 = scmp.ne.s32.totalorder %s288, %s289
    %p301 = scmp.eq.s32.totalorder %s29, 1
    %p302 = por %p300, %p301
    %p304 = scmp.ne.s32.totalorder %s289, %s303
    %p305 = scmp.eq.s32.totalorder %s29, 0
    %p306 = por %p304, %p305
    %s308 = sadd.s32 %s307, 1
    %p311 = scmp.eq.s32.totalorder %s23, 1
    %p312 = scmp.ne.s32.totalorder %s307, %s309
    %p313 = scmp.eq.s32.totalorder %s23, 0
    %p314 = por %p312, %p313
    %p315 = scmp.ne.s32.totalorder %s307, %s309
    %p316 = scmp.eq.s32.totalorder %s28, 1
    %p317 = por %p315, %p316
    %p318 = scmp.ne.s32.totalorder %s309, %s310
    %p319 = scmp.eq.s32.totalorder %s28, 0
    %p320 = por %p318, %p319
    %p321 = scmp.ne.s32.totalorder %s309, %s310
    %p322 = scmp.eq.s32.totalorder %s29, 1
    %p323 = por %p321, %p322
    %p325 = scmp.ne.s32.totalorder %s310, %s324
    %p326 = scmp.eq.s32.totalorder %s29, 0
    %p327 = por %p325, %p326
    %s329 = sadd.s32 %s328, 1
    %p332 = scmp.eq.s32.totalorder %s23, 1
    %p333 = scmp.ne.s32.totalorder %s328, %s330
    %p334 = scmp.eq.s32.totalorder %s23, 0
    %p335 = por %p333, %p334
    %p336 = scmp.ne.s32.totalorder %s328, %s330
    %p337 = scmp.eq.s32.totalorder %s28, 1
    %p338 = por %p336, %p337
    %p339 = scmp.ne.s32.totalorder %s330, %s331
    %p340 = scmp.eq.s32.totalorder %s28, 0
    %p341 = por %p339, %p340
    %p342 = scmp.ne.s32.totalorder %s330, %s331
    %p343 = scmp.eq.s32.totalorder %s29, 1
    %p344 = por %p342, %p343
    %p346 = scmp.ne.s32.totalorder %s331, %s345
    %p347 = scmp.eq.s32.totalorder %s29, 0
    %p348 = por %p346, %p347
    %s350 = sadd.s32 %s349, 1
    %p353 = scmp.eq.s32.totalorder %s23, 1
    %p354 = scmp.ne.s32.totalorder %s349, %s351
    %p355 = scmp.eq.s32.totalorder %s23, 0
    %p356 = por %p354, %p355
    %p357 = scmp.ne.s32.totalorder %s349, %s351
    %p358 = scmp.eq.s32.totalorder %s28, 1
    %p359 = por %p357, %p358
    %p360 = scmp.ne.s32.totalorder %s351, %s352
    %p361 = scmp.eq.s32.totalorder %s28, 0
    %p362 = por %p360, %p361
    %p363 = scmp.ne.s32.totalorder %s351, %s352
    %p364 = scmp.eq.s32.totalorder %s29, 1
    %p365 = por %p363, %p364
    %p367 = scmp.ne.s32.totalorder %s352, %s366
    %p368 = scmp.eq.s32.totalorder %s29, 0
    %p369 = por %p367, %p368
    %s371 = sadd.s32 %s370, 1
    %p374 = scmp.eq.s32.totalorder %s23, 1
    %p375 = scmp.ne.s32.totalorder %s370, %s372
    %p376 = scmp.eq.s32.totalorder %s23, 0
    %p377 = por %p375, %p376
    %p378 = scmp.ne.s32.totalorder %s370, %s372
    %p379 = scmp.eq.s32.totalorder %s28, 1
    %p380 = por %p378, %p379
    %p381 = scmp.ne.s32.totalorder %s372, %s373
    %p382 = scmp.eq.s32.totalorder %s28, 0
    %p383 = por %p381, %p382
    %p384 = scmp.ne.s32.totalorder %s372, %s373
    %p385 = scmp.eq.s32.totalorder %s29, 1
    %p386 = por %p384, %p385
    %p388 = scmp.ne.s32.totalorder %s373, %s387
    %p389 = scmp.eq.s32.totalorder %s29, 0
    %p390 = por %p388, %p389
    %s392 = sadd.s32 %s391, 1
    %p395 = scmp.eq.s32.totalorder %s23, 1
    %p396 = scmp.ne.s32.totalorder %s391, %s393
    %p397 = scmp.eq.s32.totalorder %s23, 0
    %p398 = por %p396, %p397
    %p399 = scmp.ne.s32.totalorder %s391, %s393
    %p400 = scmp.eq.s32.totalorder %s28, 1
    %p401 = por %p399, %p400
    %p402 = scmp.ne.s32.totalorder %s393, %s394
    %p403 = scmp.eq.s32.totalorder %s28, 0
    %p404 = por %p402, %p403
    %p405 = scmp.ne.s32.totalorder %s393, %s394
    %p406 = scmp.eq.s32.totalorder %s29, 1
    %p407 = por %p405, %p406
    %p409 = scmp.ne.s32.totalorder %s394, %s408
    %p410 = scmp.eq.s32.totalorder %s29, 0
    %p411 = por %p409, %p410
    %s412 = ssub.s32 %s30, %s42
    %s413 = ssub.s32 %s31, %s38
    %s414 = sor.u32 %s412, %s413
    %p415 = scmp.eq.s32.totalorder %s414, 0
    %s417 = sadd.s32 %s416, 1
    %s418 = scalar_select %p415, %s416, %s417
    %p421 = pneg %p415
    %p422 = scmp.eq.s32.totalorder %s23, 1
    %p423 = por %p421, %p422
    %p424 = scmp.ne.s32.totalorder %s416, %s419
    %p425 = scmp.eq.s32.totalorder %s23, 0
    %p426 = por %p424, %p425
    %p427 = scmp.ne.s32.totalorder %s416, %s419
    %p428 = scmp.eq.s32.totalorder %s28, 1
    %p429 = por %p427, %p428
    %p430 = scmp.ne.s32.totalorder %s419, %s420
    %p431 = scmp.eq.s32.totalorder %s28, 0
    %p432 = por %p430, %p431
    %p433 = scmp.ne.s32.totalorder %s419, %s420
    %p434 = scmp.eq.s32.totalorder %s29, 1
    %p435 = por %p433, %p434
    %p437 = scmp.ne.s32.totalorder %s420, %s436
    %p438 = scmp.eq.s32.totalorder %s29, 0
    %p439 = por %p437, %p438
    %p440 = scmp.le.s32.totalorder 1, %s23
    %p441 = scmp.lt.s32.totalorder %s23, 3
    %p442 = pnand %p440, %p441
    %p443 = pneg %p442
    // Predicated region
    $region9: #{tpu_custom_call.1} parent=5 // pred_check
      _
    $region10: #{tpu_custom_call.1} parent=5 // pred_check_branch
      %445 = sbr.rel (%p442) target = $region12
    $region11: #{tpu_custom_call.1} parent=5 // pred_region
      %s446 = ssub.s32 %s23, 1
      // Predicated region
      $region13: #{tpu_custom_call.1} parent=11 // pred_check
        %p447 = pneg %p110
      $region14: #{tpu_custom_call.1} parent=11 // pred_check_branch
        %449 = sbr.rel (%p447) target = $region16
      $region15: #{tpu_custom_call.1} parent=11 // pred_region
        _
      $region16: #{tpu_custom_call.1} parent=11 // pred_fallthru
        _
      // Predicated region
      $region17: #{tpu_custom_call.1} parent=11 // pred_check
        %p450 = pneg %p131
      $region18: #{tpu_custom_call.1} parent=11 // pred_check_branch
        %452 = sbr.rel (%p450) target = $region20
      $region19: #{tpu_custom_call.1} parent=11 // pred_region
        _
      $region20: #{tpu_custom_call.1} parent=11 // pred_fallthru
        _
      // Predicated region
      $region21: #{tpu_custom_call.1} parent=11 // pred_check
        %p453 = pneg %p152
      $region22: #{tpu_custom_call.1} parent=11 // pred_check_branch
        %455 = sbr.rel (%p453) target = $region24
      $region23: #{tpu_custom_call.1} parent=11 // pred_region
        _
      $region24: #{tpu_custom_call.1} parent=11 // pred_fallthru
        _
      // Predicated region
      $region25: #{tpu_custom_call.1} parent=11 // pred_check
        %p456 = pneg %p173
      $region26: #{tpu_custom_call.1} parent=11 // pred_check_branch
        %458 = sbr.rel (%p456) target = $region28
      $region27: #{tpu_custom_call.1} parent=11 // pred_region
        _
      $region28: #{tpu_custom_call.1} parent=11 // pred_fallthru
        _
      // Predicated region
      $region29: #{tpu_custom_call.1} parent=11 // pred_check
        %p459 = pneg %p194
      $region30: #{tpu_custom_call.1} parent=11 // pred_check_branch
        %461 = sbr.rel (%p459) target = $region32
      $region31: #{tpu_custom_call.1} parent=11 // pred_region
        _
      $region32: #{tpu_custom_call.1} parent=11 // pred_fallthru
        _
      // Predicated region
      $region33: #{tpu_custom_call.1} parent=11 // pred_check
        %p462 = pneg %p215
      $region34: #{tpu_custom_call.1} parent=11 // pred_check_branch
        %464 = sbr.rel (%p462) target = $region36
      $region35: #{tpu_custom_call.1} parent=11 // pred_region
        _
      $region36: #{tpu_custom_call.1} parent=11 // pred_fallthru
        _
      // Predicated region
      $region37: #{tpu_custom_call.1} parent=11 // pred_check
        %p465 = pneg %p236
      $region38: #{tpu_custom_call.1} parent=11 // pred_check_branch
        %467 = sbr.rel (%p465) target = $region40
      $region39: #{tpu_custom_call.1} parent=11 // pred_region
        _
      $region40: #{tpu_custom_call.1} parent=11 // pred_fallthru
        _
      // Predicated region
      $region41: #{tpu_custom_call.1} parent=11 // pred_check
        %p468 = pneg %p257
      $region42: #{tpu_custom_call.1} parent=11 // pred_check_branch
        %470 = sbr.rel (%p468) target = $region44
      $region43: #{tpu_custom_call.1} parent=11 // pred_region
        _
      $region44: #{tpu_custom_call.1} parent=11 // pred_fallthru
        _
      // Predicated region
      $region45: #{tpu_custom_call.1} parent=11 // pred_check
        %p471 = pneg %p278
      $region46: #{tpu_custom_call.1} parent=11 // pred_check_branch
        %473 = sbr.rel (%p471) target = $region48
      $region47: #{tpu_custom_call.1} parent=11 // pred_region
        _
      $region48: #{tpu_custom_call.1} parent=11 // pred_fallthru
        _
      // Predicated region
      $region49: #{tpu_custom_call.1} parent=11 // pred_check
        %p474 = pneg %p299
      $region50: #{tpu_custom_call.1} parent=11 // pred_check_branch
        %476 = sbr.rel (%p474) target = $region52
      $region51: #{tpu_custom_call.1} parent=11 // pred_region
        _
      $region52: #{tpu_custom_call.1} parent=11 // pred_fallthru
        _
      // Predicated region
      $region53: #{tpu_custom_call.1} parent=11 // pred_check
        %p477 = pneg %p320
      $region54: #{tpu_custom_call.1} parent=11 // pred_check_branch
        %479 = sbr.rel (%p477) target = $region56
      $region55: #{tpu_custom_call.1} parent=11 // pred_region
        _
      $region56: #{tpu_custom_call.1} parent=11 // pred_fallthru
        _
      // Predicated region
      $region57: #{tpu_custom_call.1} parent=11 // pred_check
        %p480 = pneg %p341
      $region58: #{tpu_custom_call.1} parent=11 // pred_check_branch
        %482 = sbr.rel (%p480) target = $region60
      $region59: #{tpu_custom_call.1} parent=11 // pred_region
        _
      $region60: #{tpu_custom_call.1} parent=11 // pred_fallthru
        _
      // Predicated region
      $region61: #{tpu_custom_call.1} parent=11 // pred_check
        %p483 = pneg %p362
      $region62: #{tpu_custom_call.1} parent=11 // pred_check_branch
        %485 = sbr.rel (%p483) target = $region64
      $region63: #{tpu_custom_call.1} parent=11 // pred_region
        _
      $region64: #{tpu_custom_call.1} parent=11 // pred_fallthru
        _
      // Predicated region
      $region65: #{tpu_custom_call.1} parent=11 // pred_check
        %p486 = pneg %p383
      $region66: #{tpu_custom_call.1} parent=11 // pred_check_branch
        %488 = sbr.rel (%p486) target = $region68
      $region67: #{tpu_custom_call.1} parent=11 // pred_region
        _
      $region68: #{tpu_custom_call.1} parent=11 // pred_fallthru
        _
      // Predicated region
      $region69: #{tpu_custom_call.1} parent=11 // pred_check
        %p489 = pneg %p404
      $region70: #{tpu_custom_call.1} parent=11 // pred_check_branch
        %491 = sbr.rel (%p489) target = $region72
      $region71: #{tpu_custom_call.1} parent=11 // pred_region
        _
      $region72: #{tpu_custom_call.1} parent=11 // pred_fallthru
        _
    $region12: #{tpu_custom_call.1} parent=5 // pred_fallthru
      _
    %p492 = scmp.lt.s32.totalorder %s23, 2
    // Predicated region
    $region73: #{tpu_custom_call.1} parent=5 // pred_check
      %p493 = pneg %p492
    $region74: #{tpu_custom_call.1} parent=5 // pred_check_branch
      %495 = sbr.rel (%p493) target = $region76
    $region75: #{tpu_custom_call.1} parent=5 // pred_region
      // Predicated region
      $region77: #{tpu_custom_call.1} parent=75 // pred_check
        %p496 = pneg %p57
      $region78: #{tpu_custom_call.1} parent=75 // pred_check_branch
        %498 = sbr.rel (%p496) target = $region80
      $region79: #{tpu_custom_call.1} parent=75 // pred_region
        %s499 = smul.u32 5, %s31
        %p500 = scmp.lt.s32.totalorder %s30, 1
        %s501 = scalar_select %p500, %s30, 1
        %p502 = scmp.lt.s32.totalorder %s499, 4
        %s503 = scalar_select %p502, %s499, 4
        %s504 = smul.addr %s501, 5
        %s505 = sadd.s32 %s503, %s504
        %s506 = smul.addr %s505, 8
        %s507 = scalar_lea.vmem %s0, %s506
        %s508 = smul.u32 5, %s31
      $region80: #{tpu_custom_call.1} parent=75 // pred_fallthru
        _
      // Predicated region
      $region81: #{tpu_custom_call.1} parent=75 // pred_check
        %p509 = pneg %p83
      $region82: #{tpu_custom_call.1} parent=75 // pred_check_branch
        %511 = sbr.rel (%p509) target = $region84
      $region83: #{tpu_custom_call.1} parent=75 // pred_region
        %p512 = scmp.lt.s32.totalorder %s30, 1
        %s513 = scalar_select %p512, %s30, 1
        %s514 = smul.addr %s513, 20
        %s515 = smul.addr %s514, 8
        %s516 = scalar_lea.vmem %s1, %s515
      $region84: #{tpu_custom_call.1} parent=75 // pred_fallthru
        _
    $region76: #{tpu_custom_call.1} parent=5 // pred_fallthru
      _
    %p517 = scmp.le.s32.totalorder 1, %s23
    %p518 = scmp.lt.s32.totalorder %s23, 3
    %p519 = pnand %p517, %p518
    %p520 = pneg %p519
    // Predicated region
    $region85: #{tpu_custom_call.1} parent=5 // pred_check
      _
    $region86: #{tpu_custom_call.1} parent=5 // pred_check_branch
      %522 = sbr.rel (%p519) target = $region88
    $region87: #{tpu_custom_call.1} parent=5 // pred_region
      %s523 = ssub.s32 %s23, 1
      %s524 = smul.u32 5, %s33
      %p525 = scmp.lt.s32.totalorder %s32, 1
      %s526 = scalar_select %p525, %s32, 1
      %p527 = scmp.lt.s32.totalorder %s524, 4
      %s528 = scalar_select %p527, %s524, 4
      %s529 = smul.addr %s526, 5
      %s530 = sadd.s32 %s528, %s529
      %s531 = smul.addr %s530, 8
      %s532 = scalar_lea.vmem %s0, %s531
      %p533 = pneg %p63
      %p534 = pneg %p60
      %p535 = scmp.lt.s32.totalorder %s32, 1
      %s536 = scalar_select %p535, %s32, 1
      %s537 = smul.addr %s536, 20
      %s538 = smul.addr %s537, 8
      %s539 = scalar_lea.vmem %s1, %s538
      %p540 = pneg %p89
      %p541 = pneg %p86
      %p542 = pneg %p110
      %p543 = pneg %p107
      %p544 = pneg %p131
      %p545 = pneg %p128
      %p546 = pneg %p152
      %p547 = pneg %p149
      %p548 = pneg %p173
      %p549 = pneg %p170
      %p550 = pneg %p194
      %p551 = pneg %p191
      %p552 = pneg %p215
      %p553 = pneg %p212
      %p554 = pneg %p236
      %p555 = pneg %p233
      %p556 = pneg %p257
      %p557 = pneg %p254
      %p558 = pneg %p278
      %p559 = pneg %p275
      %p560 = pneg %p299
      %p561 = pneg %p296
      %p562 = pneg %p320
      %p563 = pneg %p317
      %p564 = pneg %p341
      %p565 = pneg %p338
      %p566 = pneg %p362
      %p567 = pneg %p359
      %p568 = pneg %p383
      %p569 = pneg %p380
      %p570 = pneg %p404
      %p571 = pneg %p401
      %p572 = pneg %p432
      %p573 = pneg %p429
      %s574 = smul.u32 5, %s33
      %p575 = scmp.lt.s32.totalorder %s32, 1
      %s576 = scalar_select %p575, %s32, 1
      %p577 = scmp.lt.s32.totalorder %s574, 4
      %s578 = scalar_select %p577, %s574, 4
      %s579 = smul.addr %s576, 5
      %s580 = sadd.s32 %s578, %s579
      %s581 = smul.addr %s580, 8
      %s582 = scalar_lea.vmem %s17, %s581
      %s583 = smul.u32 5, %s33
      %p584 = scmp.lt.s32.totalorder %s32, 1
      %s585 = scalar_select %p584, %s32, 1
      %p586 = scmp.lt.s32.totalorder %s583, 4
      %s587 = scalar_select %p586, %s583, 4
      %s588 = smul.addr %s585, 5
      %s589 = sadd.s32 %s587, %s588
      %s590 = smul.addr %s589, 8
      %s591 = scalar_lea.vmem %s0, %s590
      %s592 = smul.u32 5, %s33
      %p593 = scmp.lt.s32.totalorder %s32, 1
      %s594 = scalar_select %p593, %s32, 1
      %s595 = smul.addr %s594, 20
      %s596 = smul.addr %s595, 8
      %s597 = scalar_lea.vmem %s1, %s596
      %s598 = smul.u32 5, %s33
      %p599 = scmp.lt.s32.totalorder %s32, 1
      %s600 = scalar_select %p599, %s32, 1
      %p601 = scmp.lt.s32.totalorder %s598, 4
      %s602 = scalar_select %p601, %s598, 4
      %s603 = smul.addr %s600, 5
      %s604 = sadd.s32 %s602, %s603
      %s605 = smul.addr %s604, 8
      %s606 = scalar_lea.vmem %s17, %s605
      %s607 = smul.u32 5, %s33
      %v608 = vld [vmem:[%s597] sm:$0xff]
      %v609 = vld [vmem:[%s597 + $0x8] sm:$0xff]
      %v610 = vld [vmem:[%s597 + $0x10] sm:$0xff]
      %v611 = vld [vmem:[%s597 + $0x18] sm:$0xff]
      %v612 = vld [vmem:[%s597 + $0x20] sm:$0xff]
      %v613 = vld [vmem:[%s597 + $0x28] sm:$0xff]
      %v614 = vld [vmem:[%s597 + $0x30] sm:$0xff]
      %v615 = vld [vmem:[%s597 + $0x38] sm:$0xff]
      %v616 = vld [vmem:[%s597 + $0x40] sm:$0xff]
      %v617 = vld [vmem:[%s597 + $0x48] sm:$0xff]
      %v618 = vld [vmem:[%s597 + $0x50] sm:$0xff]
      %v619 = vld [vmem:[%s597 + $0x58] sm:$0xff]
      %v620 = vld [vmem:[%s597 + $0x60] sm:$0xff]
      %v621 = vld [vmem:[%s597 + $0x68] sm:$0xff]
      %v622 = vld [vmem:[%s597 + $0x70] sm:$0xff]
      %v623 = vld [vmem:[%s597 + $0x78] sm:$0xff]
      %v624 = vld [vmem:[%s597 + $0x80] sm:$0xff]
      %v625 = vld [vmem:[%s597 + $0x88] sm:$0xff]
      %v626 = vld [vmem:[%s597 + $0x90] sm:$0xff]
      %v627 = vld [vmem:[%s597 + $0x98] sm:$0xff]
      %v628 = vld [vmem:[%s2] sm:$0xff]
      %v629 = vld [vmem:[%s2 + $0x8] sm:$0xff]
      %v630 = vld [vmem:[%s2 + $0x10] sm:$0xff]
      %v631 = vld [vmem:[%s2 + $0x18] sm:$0xff]
      %v632 = vld [vmem:[%s2 + $0x20] sm:$0xff]
      %v633 = vld [vmem:[%s2 + $0x28] sm:$0xff]
      %v634 = vld [vmem:[%s2 + $0x30] sm:$0xff]
      %v635 = vld [vmem:[%s2 + $0x38] sm:$0xff]
      %v636 = vld [vmem:[%s2 + $0x40] sm:$0xff]
      %v637 = vld [vmem:[%s2 + $0x48] sm:$0xff]
      %v638 = vld [vmem:[%s2 + $0x50] sm:$0xff]
      %v639 = vld [vmem:[%s2 + $0x58] sm:$0xff]
      %v640 = vld [vmem:[%s2 + $0x60] sm:$0xff]
      %v641 = vld [vmem:[%s2 + $0x68] sm:$0xff]
      %v642 = vld [vmem:[%s2 + $0x70] sm:$0xff]
      %v643 = vld [vmem:[%s2 + $0x78] sm:$0xff]
      %v644 = vld [vmem:[%s2 + $0x80] sm:$0xff]
      %v645 = vld [vmem:[%s2 + $0x88] sm:$0xff]
      %v646 = vld [vmem:[%s2 + $0x90] sm:$0xff]
      %v647 = vld [vmem:[%s2 + $0x98] sm:$0xff]
      %v648 = vld [vmem:[%s3] sm:$0xff]
      %v649 = vld [vmem:[%s3 + $0x8] sm:$0xff]
      %v650 = vld [vmem:[%s3 + $0x10] sm:$0xff]
      %v651 = vld [vmem:[%s3 + $0x18] sm:$0xff]
      %v652 = vld [vmem:[%s3 + $0x20] sm:$0xff]
      %v653 = vld [vmem:[%s3 + $0x28] sm:$0xff]
      %v654 = vld [vmem:[%s3 + $0x30] sm:$0xff]
      %v655 = vld [vmem:[%s3 + $0x38] sm:$0xff]
      %v656 = vld [vmem:[%s3 + $0x40] sm:$0xff]
      %v657 = vld [vmem:[%s3 + $0x48] sm:$0xff]
      %v658 = vld [vmem:[%s3 + $0x50] sm:$0xff]
      %v659 = vld [vmem:[%s3 + $0x58] sm:$0xff]
      %v660 = vld [vmem:[%s3 + $0x60] sm:$0xff]
      %v661 = vld [vmem:[%s3 + $0x68] sm:$0xff]
      %v662 = vld [vmem:[%s3 + $0x70] sm:$0xff]
      %v663 = vld [vmem:[%s3 + $0x78] sm:$0xff]
      %v664 = vld [vmem:[%s3 + $0x80] sm:$0xff]
      %v665 = vld [vmem:[%s3 + $0x88] sm:$0xff]
      %v666 = vld [vmem:[%s3 + $0x90] sm:$0xff]
      %v667 = vld [vmem:[%s3 + $0x98] sm:$0xff]
      %v668 = vld [vmem:[%s4] sm:$0xff]
      %v669 = vld [vmem:[%s4 + $0x8] sm:$0xff]
      %v670 = vld [vmem:[%s4 + $0x10] sm:$0xff]
      %v671 = vld [vmem:[%s4 + $0x18] sm:$0xff]
      %v672 = vld [vmem:[%s4 + $0x20] sm:$0xff]
      %v673 = vld [vmem:[%s4 + $0x28] sm:$0xff]
      %v674 = vld [vmem:[%s4 + $0x30] sm:$0xff]
      %v675 = vld [vmem:[%s4 + $0x38] sm:$0xff]
      %v676 = vld [vmem:[%s4 + $0x40] sm:$0xff]
      %v677 = vld [vmem:[%s4 + $0x48] sm:$0xff]
      %v678 = vld [vmem:[%s5] sm:$0xf]
      %v679 = vld [vmem:[%s6] sm:$0xf]
      %v680 = vld [vmem:[%s7] sm:$0x1]
      %v681 = vld [vmem:[%s8] sm:$0xff]
      %v682 = vld [vmem:[%s8 + $0x8] sm:$0xff]
      %v683 = vld [vmem:[%s8 + $0x10] sm:$0xff]
      %v684 = vld [vmem:[%s8 + $0x18] sm:$0xff]
      %v685 = vld [vmem:[%s8 + $0x20] sm:$0xff]
      %v686 = vld [vmem:[%s8 + $0x28] sm:$0xff]
      %v687 = vld [vmem:[%s8 + $0x30] sm:$0xff]
      %v688 = vld [vmem:[%s8 + $0x38] sm:$0xff]
      %v689 = vld [vmem:[%s9] sm:$0x1]
      %v690 = vld [vmem:[%s10] sm:$0xf]
      %v691 = vld [vmem:[%s11] sm:$0xff]
      %v692 = vld [vmem:[%s11 + $0x8] sm:$0xff]
      %v693 = vld [vmem:[%s11 + $0x10] sm:$0xff]
      %v694 = vld [vmem:[%s11 + $0x18] sm:$0xff]
      %v695 = vld [vmem:[%s11 + $0x20] sm:$0xff]
      %v696 = vld [vmem:[%s11 + $0x28] sm:$0xff]
      %v697 = vld [vmem:[%s11 + $0x30] sm:$0xff]
      %v698 = vld [vmem:[%s11 + $0x38] sm:$0xff]
      %v699 = vld [vmem:[%s12] sm:$0x1]
      %v700 = vld [vmem:[%s13] sm:$0xff]
      %v701 = vld [vmem:[%s13 + $0x8] sm:$0xff]
      %v702 = vld [vmem:[%s13 + $0x10] sm:$0xff]
      %v703 = vld [vmem:[%s13 + $0x18] sm:$0xff]
      %v704 = vld [vmem:[%s14] sm:$0x1]
      %v705 = vld [vmem:[%s15] sm:$0xff]
      %v706 = vld [vmem:[%s15 + $0x8] sm:$0xff]
      %v707 = vld [vmem:[%s15 + $0x10] sm:$0xff]
      %v708 = vld [vmem:[%s15 + $0x18] sm:$0xff]
      %v709 = vld [vmem:[%s16] sm:$0x1]
      %v710 = vld [vmem:[%s591] sm:$0xff]
      %v711 = vld [vmem:[%s591 + $0x8] sm:$0xff]
      %v712 = vld [vmem:[%s591 + $0x10] sm:$0xff]
      %v713 = vld [vmem:[%s591 + $0x18] sm:$0xff]
      %v714 = vld [vmem:[%s591 + $0x20] sm:$0xff]
      %vm715 = vcmask 31744
      %v717 = vsel %vm715, %v710, 0
      %v720 = vsel %vm715, %v711, 0
      %v723 = vsel %vm715, %v712, 0
      %v726 = vsel %vm715, %v713, 0
      %v729 = vsel %vm715, %v714, 0
      %vm731 = vcmask 1043456
      %v733 = vsel %vm731, %v678, 0
      %735 = vmatpush.msra.mxu0 0.0
      %736 = vmatpush.msra.mxu0 0.0
      %737 = vmatpush.msra.mxu0 0.0
      %738 = vmatpush.msra.mxu0 0.0
      %739 = vmatpush.msra.mxu0 0.0
      %740 = vmatpush.msra.mxu0 0.0
      %741 = vmatpush.msra.mxu0 0.0
      %742 = vmatpush.msra.mxu0 0.0
      %743 = vmatpush.msra.mxu0 0.0
      %744 = vmatpush.msra.mxu0 0.0
      %745 = vmatpush.msra.mxu0 0.0
      %746 = vmatpush.msra.mxu0 0.0
      %747 = vmatpush.msra.mxu0 0.0
      %748 = vmatpush.msra.mxu0 0.0
      %749 = vmatpush.msra.mxu0 0.0
      %750 = vmatpush.msra.mxu0 %v733
      %751 = vmatmul.f32.gmra.mxu0 %v717
      %v752 = vpop.f32.mrf.mxu0
      %v753 = vadd.f32 0.0, %v752
      %754 = vmatmul.f32.gmra.mxu0 %v720
      %v755 = vpop.f32.mrf.mxu0
      %v756 = vadd.f32 0.0, %v755
      %757 = vmatmul.f32.gmra.mxu0 %v723
      %v758 = vpop.f32.mrf.mxu0
      %v759 = vadd.f32 0.0, %v758
      %760 = vmatmul.f32.gmra.mxu0 %v726
      %v761 = vpop.f32.mrf.mxu0
      %v762 = vadd.f32 0.0, %v761
      %763 = vmatmul.f32.gmra.mxu0 %v729
      %v764 = vpop.f32.mrf.mxu0
      %v765 = vadd.f32 0.0, %v764
      %766 = vdwg.mxu0
      %v768 = vsel %vm731, %v679, 0
      %770 = vmatpush.msra.mxu0 0.0
      %771 = vmatpush.msra.mxu0 0.0
      %772 = vmatpush.msra.mxu0 0.0
      %773 = vmatpush.msra.mxu0 0.0
      %774 = vmatpush.msra.mxu0 0.0
      %775 = vmatpush.msra.mxu0 0.0
      %776 = vmatpush.msra.mxu0 0.0
      %777 = vmatpush.msra.mxu0 0.0
      %778 = vmatpush.msra.mxu0 0.0
      %779 = vmatpush.msra.mxu0 0.0
      %780 = vmatpush.msra.mxu0 0.0
      %781 = vmatpush.msra.mxu0 0.0
      %782 = vmatpush.msra.mxu0 0.0
      %783 = vmatpush.msra.mxu0 0.0
      %784 = vmatpush.msra.mxu0 0.0
      %785 = vmatpush.msra.mxu0 %v768
      %786 = vmatmul.f32.gmra.mxu0 %v717
      %v787 = vpop.f32.mrf.mxu0
      %v788 = vadd.f32 0.0, %v787
      %789 = vmatmul.f32.gmra.mxu0 %v720
      %v790 = vpop.f32.mrf.mxu0
      %v791 = vadd.f32 0.0, %v790
      %792 = vmatmul.f32.gmra.mxu0 %v723
      %v793 = vpop.f32.mrf.mxu0
      %v794 = vadd.f32 0.0, %v793
      %795 = vmatmul.f32.gmra.mxu0 %v726
      %v796 = vpop.f32.mrf.mxu0
      %v797 = vadd.f32 0.0, %v796
      %798 = vmatmul.f32.gmra.mxu0 %v729
      %v799 = vpop.f32.mrf.mxu0
      %v800 = vadd.f32 0.0, %v799
      %801 = vdwg.mxu0
      %vm802 = vcmask 326656
      %v804 = vsel %vm802, %v648, 0
      %v807 = vsel %vm802, %v649, 0
      %v810 = vsel %vm802, %v650, 0
      %v813 = vsel %vm802, %v651, 0
      %v816 = vsel %vm802, %v652, 0
      %v819 = vsel %vm802, %v653, 0
      %v822 = vsel %vm802, %v654, 0
      %v825 = vsel %vm802, %v655, 0
      %v828 = vsel %vm802, %v656, 0
      %v831 = vsel %vm802, %v657, 0
      %v834 = vsel %vm802, %v658, 0
      %v837 = vsel %vm802, %v659, 0
      %v840 = vsel %vm802, %v660, 0
      %v843 = vsel %vm802, %v661, 0
      %v846 = vsel %vm802, %v662, 0
      %v849 = vsel %vm802, %v663, 0
      %v852 = vsel %vm802, %v664, 0
      %v855 = vsel %vm802, %v665, 0
      %v858 = vsel %vm802, %v666, 0
      %v861 = vsel %vm802, %v667, 0
      %863 = vmatpush.msra.mxu0 0.0
      %864 = vmatpush.msra.mxu0 0.0
      %865 = vmatpush.msra.mxu0 0.0
      %866 = vmatpush.msra.mxu0 0.0
      %867 = vmatpush.msra.mxu0 0.0
      %868 = vmatpush.msra.mxu0 0.0
      %869 = vmatpush.msra.mxu0 0.0
      %870 = vmatpush.msra.mxu0 0.0
      %871 = vmatpush.msra.mxu0 0.0
      %872 = vmatpush.msra.mxu0 0.0
      %873 = vmatpush.msra.mxu0 0.0
      %874 = vmatpush.msra.mxu0 %v800
      %875 = vmatpush.msra.mxu0 %v797
      %876 = vmatpush.msra.mxu0 %v794
      %877 = vmatpush.msra.mxu0 %v791
      %878 = vmatpush.msra.mxu0 %v788
      %879 = vmatmul.f32.gmra.mxu0 %v804
      %v880 = vpop.f32.mrf.mxu0
      %v881 = vadd.f32 0.0, %v880
      %882 = vmatmul.f32.gmra.mxu0 %v807
      %v883 = vpop.f32.mrf.mxu0
      %v884 = vadd.f32 0.0, %v883
      %885 = vmatmul.f32.gmra.mxu0 %v810
      %v886 = vpop.f32.mrf.mxu0
      %v887 = vadd.f32 0.0, %v886
      %888 = vmatmul.f32.gmra.mxu0 %v813
      %v889 = vpop.f32.mrf.mxu0
      %v890 = vadd.f32 0.0, %v889
      %891 = vmatmul.f32.gmra.mxu0 %v816
      %v892 = vpop.f32.mrf.mxu0
      %v893 = vadd.f32 0.0, %v892
      %894 = vmatmul.f32.gmra.mxu0 %v819
      %v895 = vpop.f32.mrf.mxu0
      %v896 = vadd.f32 0.0, %v895
      %897 = vmatmul.f32.gmra.mxu0 %v822
      %v898 = vpop.f32.mrf.mxu0
      %v899 = vadd.f32 0.0, %v898
      %900 = vmatmul.f32.gmra.mxu0 %v825
      %v901 = vpop.f32.mrf.mxu0
      %v902 = vadd.f32 0.0, %v901
      %903 = vmatmul.f32.gmra.mxu0 %v828
      %v904 = vpop.f32.mrf.mxu0
      %v905 = vadd.f32 0.0, %v904
      %906 = vmatmul.f32.gmra.mxu0 %v831
      %v907 = vpop.f32.mrf.mxu0
      %v908 = vadd.f32 0.0, %v907
      %909 = vmatmul.f32.gmra.mxu0 %v834
      %v910 = vpop.f32.mrf.mxu0
      %v911 = vadd.f32 0.0, %v910
      %912 = vmatmul.f32.gmra.mxu0 %v837
      %v913 = vpop.f32.mrf.mxu0
      %v914 = vadd.f32 0.0, %v913
      %915 = vmatmul.f32.gmra.mxu0 %v840
      %v916 = vpop.f32.mrf.mxu0
      %v917 = vadd.f32 0.0, %v916
      %918 = vmatmul.f32.gmra.mxu0 %v843
      %v919 = vpop.f32.mrf.mxu0
      %v920 = vadd.f32 0.0, %v919
      %921 = vmatmul.f32.gmra.mxu0 %v846
      %v922 = vpop.f32.mrf.mxu0
      %v923 = vadd.f32 0.0, %v922
      %924 = vmatmul.f32.gmra.mxu0 %v849
      %v925 = vpop.f32.mrf.mxu0
      %v926 = vadd.f32 0.0, %v925
      %927 = vmatmul.f32.gmra.mxu0 %v852
      %v928 = vpop.f32.mrf.mxu0
      %v929 = vadd.f32 0.0, %v928
      %930 = vmatmul.f32.gmra.mxu0 %v855
      %v931 = vpop.f32.mrf.mxu0
      %v932 = vadd.f32 0.0, %v931
      %933 = vmatmul.f32.gmra.mxu0 %v858
      %v934 = vpop.f32.mrf.mxu0
      %v935 = vadd.f32 0.0, %v934
      %936 = vmatmul.f32.gmra.mxu0 %v861
      %v937 = vpop.f32.mrf.mxu0
      %v938 = vadd.f32 0.0, %v937
      %939 = vdwg.mxu0
      %v941 = vsel %vm802, %v628, 0
      %v944 = vsel %vm802, %v629, 0
      %v947 = vsel %vm802, %v630, 0
      %v950 = vsel %vm802, %v631, 0
      %v953 = vsel %vm802, %v632, 0
      %v956 = vsel %vm802, %v633, 0
      %v959 = vsel %vm802, %v634, 0
      %v962 = vsel %vm802, %v635, 0
      %v965 = vsel %vm802, %v636, 0
      %v968 = vsel %vm802, %v637, 0
      %v971 = vsel %vm802, %v638, 0
      %v974 = vsel %vm802, %v639, 0
      %v977 = vsel %vm802, %v640, 0
      %v980 = vsel %vm802, %v641, 0
      %v983 = vsel %vm802, %v642, 0
      %v986 = vsel %vm802, %v643, 0
      %v989 = vsel %vm802, %v644, 0
      %v992 = vsel %vm802, %v645, 0
      %v995 = vsel %vm802, %v646, 0
      %v998 = vsel %vm802, %v647, 0
      %1000 = vmatpush.msra.mxu0 0.0
      %1001 = vmatpush.msra.mxu0 0.0
      %1002 = vmatpush.msra.mxu0 0.0
      %1003 = vmatpush.msra.mxu0 0.0
      %1004 = vmatpush.msra.mxu0 0.0
      %1005 = vmatpush.msra.mxu0 0.0
      %1006 = vmatpush.msra.mxu0 0.0
      %1007 = vmatpush.msra.mxu0 0.0
      %1008 = vmatpush.msra.mxu0 0.0
      %1009 = vmatpush.msra.mxu0 0.0
      %1010 = vmatpush.msra.mxu0 0.0
      %1011 = vmatpush.msra.mxu0 %v765
      %1012 = vmatpush.msra.mxu0 %v762
      %1013 = vmatpush.msra.mxu0 %v759
      %1014 = vmatpush.msra.mxu0 %v756
      %1015 = vmatpush.msra.mxu0 %v753
      %1016 = vmatmul.f32.gmra.mxu0 %v941
      %v1017 = vpop.f32.mrf.mxu0
      %v1018 = vadd.f32 %v881, %v1017
      %1019 = vmatmul.f32.gmra.mxu0 %v944
      %v1020 = vpop.f32.mrf.mxu0
      %v1021 = vadd.f32 %v884, %v1020
      %1022 = vmatmul.f32.gmra.mxu0 %v947
      %v1023 = vpop.f32.mrf.mxu0
      %v1024 = vadd.f32 %v887, %v1023
      %1025 = vmatmul.f32.gmra.mxu0 %v950
      %v1026 = vpop.f32.mrf.mxu0
      %v1027 = vadd.f32 %v890, %v1026
      %1028 = vmatmul.f32.gmra.mxu0 %v953
      %v1029 = vpop.f32.mrf.mxu0
      %v1030 = vadd.f32 %v893, %v1029
      %1031 = vmatmul.f32.gmra.mxu0 %v956
      %v1032 = vpop.f32.mrf.mxu0
      %v1033 = vadd.f32 %v896, %v1032
      %1034 = vmatmul.f32.gmra.mxu0 %v959
      %v1035 = vpop.f32.mrf.mxu0
      %v1036 = vadd.f32 %v899, %v1035
      %1037 = vmatmul.f32.gmra.mxu0 %v962
      %v1038 = vpop.f32.mrf.mxu0
      %v1039 = vadd.f32 %v902, %v1038
      %1040 = vmatmul.f32.gmra.mxu0 %v965
      %v1041 = vpop.f32.mrf.mxu0
      %v1042 = vadd.f32 %v905, %v1041
      %1043 = vmatmul.f32.gmra.mxu0 %v968
      %v1044 = vpop.f32.mrf.mxu0
      %v1045 = vadd.f32 %v908, %v1044
      %1046 = vmatmul.f32.gmra.mxu0 %v971
      %v1047 = vpop.f32.mrf.mxu0
      %v1048 = vadd.f32 %v911, %v1047
      %1049 = vmatmul.f32.gmra.mxu0 %v974
      %v1050 = vpop.f32.mrf.mxu0
      %v1051 = vadd.f32 %v914, %v1050
      %1052 = vmatmul.f32.gmra.mxu0 %v977
      %v1053 = vpop.f32.mrf.mxu0
      %v1054 = vadd.f32 %v917, %v1053
      %1055 = vmatmul.f32.gmra.mxu0 %v980
      %v1056 = vpop.f32.mrf.mxu0
      %v1057 = vadd.f32 %v920, %v1056
      %1058 = vmatmul.f32.gmra.mxu0 %v983
      %v1059 = vpop.f32.mrf.mxu0
      %v1060 = vadd.f32 %v923, %v1059
      %1061 = vmatmul.f32.gmra.mxu0 %v986
      %v1062 = vpop.f32.mrf.mxu0
      %v1063 = vadd.f32 %v926, %v1062
      %1064 = vmatmul.f32.gmra.mxu0 %v989
      %v1065 = vpop.f32.mrf.mxu0
      %v1066 = vadd.f32 %v929, %v1065
      %1067 = vmatmul.f32.gmra.mxu0 %v992
      %v1068 = vpop.f32.mrf.mxu0
      %v1069 = vadd.f32 %v932, %v1068
      %1070 = vmatmul.f32.gmra.mxu0 %v995
      %v1071 = vpop.f32.mrf.mxu0
      %v1072 = vadd.f32 %v935, %v1071
      %1073 = vmatmul.f32.gmra.mxu0 %v998
      %v1074 = vpop.f32.mrf.mxu0
      %v1075 = vadd.f32 %v938, %v1074
      %1076 = vdwg.mxu0
      %v1078 = vperm.slane %v680, 0
      %v1080 = vadd.f32 %v1018, %v1078
      %v1081 = vadd.f32 %v1021, %v1078
      %v1082 = vadd.f32 %v1024, %v1078
      %v1083 = vadd.f32 %v1027, %v1078
      %v1084 = vadd.f32 %v1030, %v1078
      %v1085 = vadd.f32 %v1033, %v1078
      %v1086 = vadd.f32 %v1036, %v1078
      %v1087 = vadd.f32 %v1039, %v1078
      %v1088 = vadd.f32 %v1042, %v1078
      %v1089 = vadd.f32 %v1045, %v1078
      %v1090 = vadd.f32 %v1048, %v1078
      %v1091 = vadd.f32 %v1051, %v1078
      %v1092 = vadd.f32 %v1054, %v1078
      %v1093 = vadd.f32 %v1057, %v1078
      %v1094 = vadd.f32 %v1060, %v1078
      %v1095 = vadd.f32 %v1063, %v1078
      %v1096 = vadd.f32 %v1066, %v1078
      %v1097 = vadd.f32 %v1069, %v1078
      %v1098 = vadd.f32 %v1072, %v1078
      %v1099 = vadd.f32 %v1075, %v1078
      %v1100 = vmax.f32 %v1080, 0.0
      %v1101 = vmax.f32 %v1081, 0.0
      %v1102 = vmax.f32 %v1082, 0.0
      %v1103 = vmax.f32 %v1083, 0.0
      %v1104 = vmax.f32 %v1084, 0.0
      %v1105 = vmax.f32 %v1085, 0.0
      %v1106 = vmax.f32 %v1086, 0.0
      %v1107 = vmax.f32 %v1087, 0.0
      %v1108 = vmax.f32 %v1088, 0.0
      %v1109 = vmax.f32 %v1089, 0.0
      %v1110 = vmax.f32 %v1090, 0.0
      %v1111 = vmax.f32 %v1091, 0.0
      %v1112 = vmax.f32 %v1092, 0.0
      %v1113 = vmax.f32 %v1093, 0.0
      %v1114 = vmax.f32 %v1094, 0.0
      %v1115 = vmax.f32 %v1095, 0.0
      %v1116 = vmax.f32 %v1096, 0.0
      %v1117 = vmax.f32 %v1097, 0.0
      %v1118 = vmax.f32 %v1098, 0.0
      %v1119 = vmax.f32 %v1099, 0.0
      %v1121 = vperm.slane %v689, 0
      %vm1123 = vcmask 523264
      %v1125 = vsel %vm1123, %v1100, 0
      %v1128 = vsel %vm1123, %v1101, 0
      %v1131 = vsel %vm1123, %v1102, 0
      %v1134 = vsel %vm1123, %v1103, 0
      %v1137 = vsel %vm1123, %v1104, 0
      %v1140 = vsel %vm1123, %v1105, 0
      %v1143 = vsel %vm1123, %v1106, 0
      %v1146 = vsel %vm1123, %v1107, 0
      %v1149 = vsel %vm1123, %v1108, 0
      %v1152 = vsel %vm1123, %v1109, 0
      %v1155 = vsel %vm1123, %v1110, 0
      %v1158 = vsel %vm1123, %v1111, 0
      %v1161 = vsel %vm1123, %v1112, 0
      %v1164 = vsel %vm1123, %v1113, 0
      %v1167 = vsel %vm1123, %v1114, 0
      %v1170 = vsel %vm1123, %v1115, 0
      %v1173 = vsel %vm1123, %v1116, 0
      %v1176 = vsel %vm1123, %v1117, 0
      %v1179 = vsel %vm1123, %v1118, 0
      %v1182 = vsel %vm1123, %v1119, 0
      %1184 = vmatpush.msra.mxu0 0.0
      %1185 = vmatpush.msra.mxu0 0.0
      %1186 = vmatpush.msra.mxu0 0.0
      %1187 = vmatpush.msra.mxu0 0.0
      %1188 = vmatpush.msra.mxu0 0.0
      %1189 = vmatpush.msra.mxu0 0.0
      %1190 = vmatpush.msra.mxu0 0.0
      %1191 = vmatpush.msra.mxu0 0.0
      %1192 = vmatpush.msra.mxu0 %v688
      %1193 = vmatpush.msra.mxu0 %v687
      %1194 = vmatpush.msra.mxu0 %v686
      %1195 = vmatpush.msra.mxu0 %v685
      %1196 = vmatpush.msra.mxu0 %v684
      %1197 = vmatpush.msra.mxu0 %v683
      %1198 = vmatpush.msra.mxu0 %v682
      %1199 = vmatpush.msra.mxu0 %v681
      %1200 = vmatmul.f32.gmra.mxu0 %v1125
      %v1201 = vpop.f32.mrf.mxu0
      %v1202 = vadd.f32 %v1121, %v1201
      %1203 = vmatmul.f32.gmra.mxu0 %v1128
      %v1204 = vpop.f32.mrf.mxu0
      %v1205 = vadd.f32 %v1121, %v1204
      %1206 = vmatmul.f32.gmra.mxu0 %v1131
      %v1207 = vpop.f32.mrf.mxu0
      %v1208 = vadd.f32 %v1121, %v1207
      %1209 = vmatmul.f32.gmra.mxu0 %v1134
      %v1210 = vpop.f32.mrf.mxu0
      %v1211 = vadd.f32 %v1121, %v1210
      %1212 = vmatmul.f32.gmra.mxu0 %v1137
      %v1213 = vpop.f32.mrf.mxu0
      %v1214 = vadd.f32 %v1121, %v1213
      %1215 = vmatmul.f32.gmra.mxu0 %v1140
      %v1216 = vpop.f32.mrf.mxu0
      %v1217 = vadd.f32 %v1121, %v1216
      %1218 = vmatmul.f32.gmra.mxu0 %v1143
      %v1219 = vpop.f32.mrf.mxu0
      %v1220 = vadd.f32 %v1121, %v1219
      %1221 = vmatmul.f32.gmra.mxu0 %v1146
      %v1222 = vpop.f32.mrf.mxu0
      %v1223 = vadd.f32 %v1121, %v1222
      %1224 = vmatmul.f32.gmra.mxu0 %v1149
      %v1225 = vpop.f32.mrf.mxu0
      %v1226 = vadd.f32 %v1121, %v1225
      %1227 = vmatmul.f32.gmra.mxu0 %v1152
      %v1228 = vpop.f32.mrf.mxu0
      %v1229 = vadd.f32 %v1121, %v1228
      %1230 = vmatmul.f32.gmra.mxu0 %v1155
      %v1231 = vpop.f32.mrf.mxu0
      %v1232 = vadd.f32 %v1121, %v1231
      %1233 = vmatmul.f32.gmra.mxu0 %v1158
      %v1234 = vpop.f32.mrf.mxu0
      %v1235 = vadd.f32 %v1121, %v1234
      %1236 = vmatmul.f32.gmra.mxu0 %v1161
      %v1237 = vpop.f32.mrf.mxu0
      %v1238 = vadd.f32 %v1121, %v1237
      %1239 = vmatmul.f32.gmra.mxu0 %v1164
      %v1240 = vpop.f32.mrf.mxu0
      %v1241 = vadd.f32 %v1121, %v1240
      %1242 = vmatmul.f32.gmra.mxu0 %v1167
      %v1243 = vpop.f32.mrf.mxu0
      %v1244 = vadd.f32 %v1121, %v1243
      %1245 = vmatmul.f32.gmra.mxu0 %v1170
      %v1246 = vpop.f32.mrf.mxu0
      %v1247 = vadd.f32 %v1121, %v1246
      %1248 = vmatmul.f32.gmra.mxu0 %v1173
      %v1249 = vpop.f32.mrf.mxu0
      %v1250 = vadd.f32 %v1121, %v1249
      %1251 = vmatmul.f32.gmra.mxu0 %v1176
      %v1252 = vpop.f32.mrf.mxu0
      %v1253 = vadd.f32 %v1121, %v1252
      %1254 = vmatmul.f32.gmra.mxu0 %v1179
      %v1255 = vpop.f32.mrf.mxu0
      %v1256 = vadd.f32 %v1121, %v1255
      %1257 = vmatmul.f32.gmra.mxu0 %v1182
      %v1258 = vpop.f32.mrf.mxu0
      %v1259 = vadd.f32 %v1121, %v1258
      %1260 = vdwg.mxu0
      %v1261 = vmax.f32 %v1202, 0.0
      %v1262 = vmax.f32 %v1205, 0.0
      %v1263 = vmax.f32 %v1208, 0.0
      %v1264 = vmax.f32 %v1211, 0.0
      %v1265 = vmax.f32 %v1214, 0.0
      %v1266 = vmax.f32 %v1217, 0.0
      %v1267 = vmax.f32 %v1220, 0.0
      %v1268 = vmax.f32 %v1223, 0.0
      %v1269 = vmax.f32 %v1226, 0.0
      %v1270 = vmax.f32 %v1229, 0.0
      %v1271 = vmax.f32 %v1232, 0.0
      %v1272 = vmax.f32 %v1235, 0.0
      %v1273 = vmax.f32 %v1238, 0.0
      %v1274 = vmax.f32 %v1241, 0.0
      %v1275 = vmax.f32 %v1244, 0.0
      %v1276 = vmax.f32 %v1247, 0.0
      %v1277 = vmax.f32 %v1250, 0.0
      %v1278 = vmax.f32 %v1253, 0.0
      %v1279 = vmax.f32 %v1256, 0.0
      %v1280 = vmax.f32 %v1259, 0.0
      %v1281 = vmul.f32 %v1261, %v608
      %v1282 = vmul.f32 %v1262, %v609
      %v1283 = vmul.f32 %v1263, %v610
      %v1284 = vmul.f32 %v1264, %v611
      %v1285 = vmul.f32 %v1265, %v612
      %v1286 = vmul.f32 %v1266, %v613
      %v1287 = vmul.f32 %v1267, %v614
      %v1288 = vmul.f32 %v1268, %v615
      %v1289 = vmul.f32 %v1269, %v616
      %v1290 = vmul.f32 %v1270, %v617
      %v1291 = vmul.f32 %v1271, %v618
      %v1292 = vmul.f32 %v1272, %v619
      %v1293 = vmul.f32 %v1273, %v620
      %v1294 = vmul.f32 %v1274, %v621
      %v1295 = vmul.f32 %v1275, %v622
      %v1296 = vmul.f32 %v1276, %v623
      %v1297 = vmul.f32 %v1277, %v624
      %v1298 = vmul.f32 %v1278, %v625
      %v1299 = vmul.f32 %v1279, %v626
      %v1300 = vmul.f32 %v1280, %v627
      %vm1301 = vcmask 261120
      %v1303 = vsel %vm1301, %v669, 0
      %v1306 = vsel %vm1301, %v671, 0
      %v1309 = vsel %vm1301, %v673, 0
      %v1312 = vsel %vm1301, %v675, 0
      %v1315 = vsel %vm1301, %v677, 0
      %1317 = vmatpush.msra.mxu0 %v1296
      %1318 = vmatpush.msra.mxu0 %v1295
      %1319 = vmatpush.msra.mxu0 %v1294
      %1320 = vmatpush.msra.mxu0 %v1293
      %1321 = vmatpush.msra.mxu0 %v1292
      %1322 = vmatpush.msra.mxu0 %v1291
      %1323 = vmatpush.msra.mxu0 %v1290
      %1324 = vmatpush.msra.mxu0 %v1289
      %1325 = vmatpush.msra.mxu0 %v1288
      %1326 = vmatpush.msra.mxu0 %v1287
      %1327 = vmatpush.msra.mxu0 %v1286
      %1328 = vmatpush.msra.mxu0 %v1285
      %1329 = vmatpush.msra.mxu0 %v1284
      %1330 = vmatpush.msra.mxu0 %v1283
      %1331 = vmatpush.msra.mxu0 %v1282
      %1332 = vmatpush.msra.mxu0 %v1281
      %1333 = vmatmul.f32.gmra.mxu0 %v668
      %v1334 = vpop.f32.mrf.mxu0
      %v1335 = vadd.f32 0.0, %v1334
      %1336 = vmatmul.f32.gmra.mxu0 %v670
      %v1337 = vpop.f32.mrf.mxu0
      %v1338 = vadd.f32 0.0, %v1337
      %1339 = vmatmul.f32.gmra.mxu0 %v672
      %v1340 = vpop.f32.mrf.mxu0
      %v1341 = vadd.f32 0.0, %v1340
      %1342 = vmatmul.f32.gmra.mxu0 %v674
      %v1343 = vpop.f32.mrf.mxu0
      %v1344 = vadd.f32 0.0, %v1343
      %1345 = vmatmul.f32.gmra.mxu0 %v676
      %v1346 = vpop.f32.mrf.mxu0
      %v1347 = vadd.f32 0.0, %v1346
      %1348 = vdwg.mxu0
      %1349 = vmatpush.msra.mxu0 0.0
      %1350 = vmatpush.msra.mxu0 0.0
      %1351 = vmatpush.msra.mxu0 0.0
      %1352 = vmatpush.msra.mxu0 0.0
      %1353 = vmatpush.msra.mxu0 0.0
      %1354 = vmatpush.msra.mxu0 0.0
      %1355 = vmatpush.msra.mxu0 0.0
      %1356 = vmatpush.msra.mxu0 0.0
      %1357 = vmatpush.msra.mxu0 0.0
      %1358 = vmatpush.msra.mxu0 0.0
      %1359 = vmatpush.msra.mxu0 0.0
      %1360 = vmatpush.msra.mxu0 0.0
      %1361 = vmatpush.msra.mxu0 %v1300
      %1362 = vmatpush.msra.mxu0 %v1299
      %1363 = vmatpush.msra.mxu0 %v1298
      %1364 = vmatpush.msra.mxu0 %v1297
      %1365 = vmatmul.f32.gmra.mxu0 %v1303
      %v1366 = vpop.f32.mrf.mxu0
      %v1367 = vadd.f32 %v1335, %v1366
      %1368 = vmatmul.f32.gmra.mxu0 %v1306
      %v1369 = vpop.f32.mrf.mxu0
      %v1370 = vadd.f32 %v1338, %v1369
      %1371 = vmatmul.f32.gmra.mxu0 %v1309
      %v1372 = vpop.f32.mrf.mxu0
      %v1373 = vadd.f32 %v1341, %v1372
      %1374 = vmatmul.f32.gmra.mxu0 %v1312
      %v1375 = vpop.f32.mrf.mxu0
      %v1376 = vadd.f32 %v1344, %v1375
      %1377 = vmatmul.f32.gmra.mxu0 %v1315
      %v1378 = vpop.f32.mrf.mxu0
      %v1379 = vadd.f32 %v1347, %v1378
      %1380 = vdwg.mxu0
      %v1382 = vsel %vm1123, %v1367, 0
      %v1385 = vsel %vm1123, %v1370, 0
      %v1388 = vsel %vm1123, %v1373, 0
      %v1391 = vsel %vm1123, %v1376, 0
      %v1394 = vsel %vm1123, %v1379, 0
      %1396 = vmatpush.msra.mxu0 0.0
      %1397 = vmatpush.msra.mxu0 0.0
      %1398 = vmatpush.msra.mxu0 0.0
      %1399 = vmatpush.msra.mxu0 0.0
      %1400 = vmatpush.msra.mxu0 0.0
      %1401 = vmatpush.msra.mxu0 0.0
      %1402 = vmatpush.msra.mxu0 0.0
      %1403 = vmatpush.msra.mxu0 0.0
      %1404 = vmatpush.msra.mxu0 %v698
      %1405 = vmatpush.msra.mxu0 %v697
      %1406 = vmatpush.msra.mxu0 %v696
      %1407 = vmatpush.msra.mxu0 %v695
      %1408 = vmatpush.msra.mxu0 %v694
      %1409 = vmatpush.msra.mxu0 %v693
      %1410 = vmatpush.msra.mxu0 %v692
      %1411 = vmatpush.msra.mxu0 %v691
      %1412 = vmatmul.f32.gmra.mxu0 %v1382
      %v1413 = vpop.f32.mrf.mxu0
      %v1414 = vadd.f32 0.0, %v1413
      %1415 = vmatmul.f32.gmra.mxu0 %v1385
      %v1416 = vpop.f32.mrf.mxu0
      %v1417 = vadd.f32 0.0, %v1416
      %1418 = vmatmul.f32.gmra.mxu0 %v1388
      %v1419 = vpop.f32.mrf.mxu0
      %v1420 = vadd.f32 0.0, %v1419
      %1421 = vmatmul.f32.gmra.mxu0 %v1391
      %v1422 = vpop.f32.mrf.mxu0
      %v1423 = vadd.f32 0.0, %v1422
      %1424 = vmatmul.f32.gmra.mxu0 %v1394
      %v1425 = vpop.f32.mrf.mxu0
      %v1426 = vadd.f32 0.0, %v1425
      %1427 = vdwg.mxu0
      %v1429 = vsel %vm731, %v690, 0
      %1431 = vmatpush.msra.mxu0 0.0
      %1432 = vmatpush.msra.mxu0 0.0
      %1433 = vmatpush.msra.mxu0 0.0
      %1434 = vmatpush.msra.mxu0 0.0
      %1435 = vmatpush.msra.mxu0 0.0
      %1436 = vmatpush.msra.mxu0 0.0
      %1437 = vmatpush.msra.mxu0 0.0
      %1438 = vmatpush.msra.mxu0 0.0
      %1439 = vmatpush.msra.mxu0 0.0
      %1440 = vmatpush.msra.mxu0 0.0
      %1441 = vmatpush.msra.mxu0 0.0
      %1442 = vmatpush.msra.mxu0 0.0
      %1443 = vmatpush.msra.mxu0 0.0
      %1444 = vmatpush.msra.mxu0 0.0
      %1445 = vmatpush.msra.mxu0 0.0
      %1446 = vmatpush.msra.mxu0 %v1429
      %1447 = vmatmul.f32.gmra.mxu0 %v717
      %v1448 = vpop.f32.mrf.mxu0
      %v1449 = vadd.f32 %v1414, %v1448
      %1450 = vmatmul.f32.gmra.mxu0 %v720
      %v1451 = vpop.f32.mrf.mxu0
      %v1452 = vadd.f32 %v1417, %v1451
      %1453 = vmatmul.f32.gmra.mxu0 %v723
      %v1454 = vpop.f32.mrf.mxu0
      %v1455 = vadd.f32 %v1420, %v1454
      %1456 = vmatmul.f32.gmra.mxu0 %v726
      %v1457 = vpop.f32.mrf.mxu0
      %v1458 = vadd.f32 %v1423, %v1457
      %1459 = vmatmul.f32.gmra.mxu0 %v729
      %v1460 = vpop.f32.mrf.mxu0
      %v1461 = vadd.f32 %v1426, %v1460
      %1462 = vdwg.mxu0
      %v1464 = vperm.slane %v699, 0
      %v1466 = vadd.f32 %v1449, %v1464
      %v1467 = vadd.f32 %v1452, %v1464
      %v1468 = vadd.f32 %v1455, %v1464
      %v1469 = vadd.f32 %v1458, %v1464
      %v1470 = vadd.f32 %v1461, %v1464
      %v1471 = vmax.f32 %v1466, 0.0
      %v1472 = vmax.f32 %v1467, 0.0
      %v1473 = vmax.f32 %v1468, 0.0
      %v1474 = vmax.f32 %v1469, 0.0
      %v1475 = vmax.f32 %v1470, 0.0
      %v1477 = vperm.slane %v704, 0
      %v1480 = vsel %vm1301, %v1471, 0
      %v1483 = vsel %vm1301, %v1472, 0
      %v1486 = vsel %vm1301, %v1473, 0
      %v1489 = vsel %vm1301, %v1474, 0
      %v1492 = vsel %vm1301, %v1475, 0
      %1494 = vmatpush.msra.mxu0 0.0
      %1495 = vmatpush.msra.mxu0 0.0
      %1496 = vmatpush.msra.mxu0 0.0
      %1497 = vmatpush.msra.mxu0 0.0
      %1498 = vmatpush.msra.mxu0 0.0
      %1499 = vmatpush.msra.mxu0 0.0
      %1500 = vmatpush.msra.mxu0 0.0
      %1501 = vmatpush.msra.mxu0 0.0
      %1502 = vmatpush.msra.mxu0 0.0
      %1503 = vmatpush.msra.mxu0 0.0
      %1504 = vmatpush.msra.mxu0 0.0
      %1505 = vmatpush.msra.mxu0 0.0
      %1506 = vmatpush.msra.mxu0 %v703
      %1507 = vmatpush.msra.mxu0 %v702
      %1508 = vmatpush.msra.mxu0 %v701
      %1509 = vmatpush.msra.mxu0 %v700
      %1510 = vmatmul.f32.gmra.mxu0 %v1480
      %v1511 = vpop.f32.mrf.mxu0
      %v1512 = vadd.f32 %v1477, %v1511
      %1513 = vmatmul.f32.gmra.mxu0 %v1483
      %v1514 = vpop.f32.mrf.mxu0
      %v1515 = vadd.f32 %v1477, %v1514
      %1516 = vmatmul.f32.gmra.mxu0 %v1486
      %v1517 = vpop.f32.mrf.mxu0
      %v1518 = vadd.f32 %v1477, %v1517
      %1519 = vmatmul.f32.gmra.mxu0 %v1489
      %v1520 = vpop.f32.mrf.mxu0
      %v1521 = vadd.f32 %v1477, %v1520
      %1522 = vmatmul.f32.gmra.mxu0 %v1492
      %v1523 = vpop.f32.mrf.mxu0
      %v1524 = vadd.f32 %v1477, %v1523
      %1525 = vdwg.mxu0
      %v1526 = vmax.f32 %v1512, 0.0
      %v1527 = vmax.f32 %v1515, 0.0
      %v1528 = vmax.f32 %v1518, 0.0
      %v1529 = vmax.f32 %v1521, 0.0
      %v1530 = vmax.f32 %v1524, 0.0
      %v1532 = vperm.slane %v709, 0
      %v1535 = vsel %vm1301, %v1526, 0
      %v1538 = vsel %vm1301, %v1527, 0
      %v1541 = vsel %vm1301, %v1528, 0
      %v1544 = vsel %vm1301, %v1529, 0
      %v1547 = vsel %vm1301, %v1530, 0
      %1549 = vmatpush.msra.mxu0 0.0
      %1550 = vmatpush.msra.mxu0 0.0
      %1551 = vmatpush.msra.mxu0 0.0
      %1552 = vmatpush.msra.mxu0 0.0
      %1553 = vmatpush.msra.mxu0 0.0
      %1554 = vmatpush.msra.mxu0 0.0
      %1555 = vmatpush.msra.mxu0 0.0
      %1556 = vmatpush.msra.mxu0 0.0
      %1557 = vmatpush.msra.mxu0 0.0
      %1558 = vmatpush.msra.mxu0 0.0
      %1559 = vmatpush.msra.mxu0 0.0
      %1560 = vmatpush.msra.mxu0 0.0
      %1561 = vmatpush.msra.mxu0 %v708
      %1562 = vmatpush.msra.mxu0 %v707
      %1563 = vmatpush.msra.mxu0 %v706
      %1564 = vmatpush.msra.mxu0 %v705
      %1565 = vmatmul.f32.gmra.mxu0 %v1535
      %v1566 = vpop.f32.mrf.mxu0
      %v1567 = vadd.f32 %v1532, %v1566
      %1568 = vmatmul.f32.gmra.mxu0 %v1538
      %v1569 = vpop.f32.mrf.mxu0
      %v1570 = vadd.f32 %v1532, %v1569
      %1571 = vmatmul.f32.gmra.mxu0 %v1541
      %v1572 = vpop.f32.mrf.mxu0
      %v1573 = vadd.f32 %v1532, %v1572
      %1574 = vmatmul.f32.gmra.mxu0 %v1544
      %v1575 = vpop.f32.mrf.mxu0
      %v1576 = vadd.f32 %v1532, %v1575
      %1577 = vmatmul.f32.gmra.mxu0 %v1547
      %v1578 = vpop.f32.mrf.mxu0
      %v1579 = vadd.f32 %v1532, %v1578
      %1580 = vdwg.mxu0
      %v1581 = vadd.f32 %v710, %v1567
      %v1582 = vadd.f32 %v711, %v1570
      %v1583 = vadd.f32 %v712, %v1573
      %v1584 = vadd.f32 %v713, %v1576
      %v1585 = vadd.f32 %v714, %v1579
      %1586 = vst.msk [vmem:[%s606] sm:$0xff] %vm715, %v1581
      %1587 = vst.msk [vmem:[%s606 + $0x8] sm:$0xff] %vm715, %v1582
      %1588 = vst.msk [vmem:[%s606 + $0x10] sm:$0xff] %vm715, %v1583
      %1589 = vst.msk [vmem:[%s606 + $0x18] sm:$0xff] %vm715, %v1584
      %1590 = vst.msk [vmem:[%s606 + $0x20] sm:$0xff] %vm715, %v1585
      %s1591 = smul.u32 5, %s33
      %p1592 = scmp.lt.s32.totalorder %s32, 1
      %s1593 = scalar_select %p1592, %s32, 1
      %p1594 = scmp.lt.s32.totalorder %s1591, 4
      %s1595 = scalar_select %p1594, %s1591, 4
      %s1596 = smul.addr %s1593, 5
      %s1597 = sadd.s32 %s1595, %s1596
      %s1598 = smul.addr %s1597, 8
      %s1599 = scalar_lea.vmem %s17, %s1598
      // Predicated region
      $region89: #{tpu_custom_call.1} parent=87 // pred_check
        %p1600 = pneg %p429
      $region90: #{tpu_custom_call.1} parent=87 // pred_check_branch
        %1602 = sbr.rel (%p1600) target = $region92
      $region91: #{tpu_custom_call.1} parent=87 // pred_region
        %s1603 = smul.u32 5, %s33
      $region92: #{tpu_custom_call.1} parent=87 // pred_fallthru
        _
    $region88: #{tpu_custom_call.1} parent=5 // pred_fallthru
      _
    %p1604 = scmp.le.s32.totalorder 2, %s23
    // Predicated region
    $region93: #{tpu_custom_call.1} parent=5 // pred_check
      %p1605 = pneg %p1604
    $region94: #{tpu_custom_call.1} parent=5 // pred_check_branch
      %1607 = sbr.rel (%p1605) target = $region96
    $region95: #{tpu_custom_call.1} parent=5 // pred_region
      %s1608 = ssub.s32 %s23, 2
      // Predicated region
      $region97: #{tpu_custom_call.1} parent=95 // pred_check
        %p1609 = pneg %p435
      $region98: #{tpu_custom_call.1} parent=95 // pred_check_branch
        %1611 = sbr.rel (%p1609) target = $region100
      $region99: #{tpu_custom_call.1} parent=95 // pred_region
        %s1612 = smul.u32 5, %s35
        %p1613 = scmp.lt.s32.totalorder %s34, 1
        %s1614 = scalar_select %p1613, %s34, 1
        %p1615 = scmp.lt.s32.totalorder %s1612, 4
        %s1616 = scalar_select %p1615, %s1612, 4
        %s1617 = smul.addr %s1614, 5
        %s1618 = sadd.s32 %s1616, %s1617
        %s1619 = smul.addr %s1618, 8
        %s1620 = scalar_lea.vmem %s17, %s1619
      $region100: #{tpu_custom_call.1} parent=95 // pred_fallthru
        _
    $region96: #{tpu_custom_call.1} parent=5 // pred_fallthru
      _
  $region6: #{tpu_custom_call.1} parent=0 // loop_footer
    %s27 = sadd.s32 1, %s23
  $region7: #{tpu_custom_call.1} parent=0 // loop_footer_branch
    %22 = sbr.rel target = $region3
  $region8: #{tpu_custom_call.1} parent=0 // loop_exit
    _

</llo_original>
